<compile_context>
chip_gen: v7x
topology: tpu7x:2x2x1
jax: 0.10.0
libtpu: 0.0.40
codegen_flags: <defaults>
</compile_context>

<pallas_src>
import functools

import jax
import jax.numpy as jnp
from jax.experimental import pallas as pl
from jax.experimental.pallas import tpu as pltpu


def _log_sigmoid(x):
    # numerically-stable log(sigmoid(x)) = min(x,0) - log1p(exp(-|x|))
    return jnp.minimum(x, 0.0) - jnp.log1p(jnp.exp(-jnp.abs(x)))


def _lstm_kernel(y_ref, wih1_ref, whh1_ref, b1_ref, w2_ref, b2_ref,
                 out_ref, *, hidden, seq_len):
    """Single invocation: whole sequence resident in VMEM, time loop unrolled.

    Gate column order inside all packed weights/biases is (i, f, o, g) so the
    three sigmoid gates are a contiguous [:, :3H] slab.
    """
    H = hidden
    B = y_ref.shape[0]

    # Load everything once (all operands are tiny and VMEM-resident).
    y = y_ref[...]            # (B, T)
    wih1 = wih1_ref[...]      # (1, 4H)   input dim is 1 -> broadcasted mul
    whh1 = whh1_ref[...]      # (H, 4H)
    b1 = b1_ref[...]          # (1, 4H)
    w2 = w2_ref[...]          # (2H, 4H)  fused [W_ih2; W_hh2]
    b2 = b2_ref[...]          # (1, 4H)

    h1 = jnp.zeros((B, H), jnp.float32)
    c1 = jnp.zeros((B, H), jnp.float32)
    h2 = jnp.zeros((B, H), jnp.float32)
    c2 = jnp.zeros((B, H), jnp.float32)

    outs = []
    # Static unroll: seq_len is small; the LLO scheduler sees the whole loop.
    for t in range(seq_len):
        x_t = y[:, t:t + 1]                                     # (B, 1)

        # ---- LSTMCell 1 (input dim 1 -> outer product is a broadcast mul) ----
        gates1 = (x_t * wih1
                  + jnp.dot(h1, whh1, preferred_element_type=jnp.float32)
                  + b1)                                          # (B, 4H)
        s1 = jax.nn.sigmoid(gates1[:, :3 * H])                   # i, f, o
        g1 = jnp.tanh(gates1[:, 3 * H:])                         # g
        i1, f1, o1 = s1[:, :H], s1[:, H:2 * H], s1[:, 2 * H:]
        c1 = f1 * c1 + i1 * g1
        h1 = o1 * jnp.tanh(c1)

        # ---- LSTMCell 2 (fused single K=2H matmul) ----
        hcat = jnp.concatenate([h1, h2], axis=-1)                # (B, 2H)
        gates2 = (jnp.dot(hcat, w2, preferred_element_type=jnp.float32)
                  + b2)                                          # (B, 4H)
        s2 = jax.nn.sigmoid(gates2[:, :3 * H])
        g2 = jnp.tanh(gates2[:, 3 * H:])
        i2, f2, o2 = s2[:, :H], s2[:, H:2 * H], s2[:, 2 * H:]
        c2 = f2 * c2 + i2 * g2
        h2 = o2 * jnp.tanh(c2)

        outs.append(_log_sigmoid(h2))                            # (B, H)

    # Single lane-dense (B, T*H) writeback.
    out_ref[...] = jnp.concatenate(outs, axis=-1)


# --------------------------- parameter packing ---------------------------
def _reorder_ifgo_to_ifog(w):
    """Permute gate blocks (i,f,g,o) -> (i,f,o,g) along the last axis."""
    H = w.shape[-1] // 4
    return jnp.concatenate([w[:, :2 * H], w[:, 3 * H:], w[:, 2 * H:3 * H]],
                           axis=-1)


def pack_params(params):
    """Torch-layout params (i,f,g,o order) -> kernel layout (i,f,o,g order,
    layer-2 weights fused into a single (2H, 4H) matrix)."""
    wih1, whh1, b1, wih2, whh2, b2 = params
    wih1p = _reorder_ifgo_to_ifog(wih1)
    whh1p = _reorder_ifgo_to_ifog(whh1)
    b1p = _reorder_ifgo_to_ifog(b1)
    w2p = jnp.concatenate([_reorder_ifgo_to_ifog(wih2),
                           _reorder_ifgo_to_ifog(whh2)], axis=0)  # (2H, 4H)
    b2p = _reorder_ifgo_to_ifog(b2)
    return wih1p, whh1p, b1p, w2p, b2p


def lstm_predictor(y, params, *, hidden):
    """y: (B, T) float32.  Returns (out1, out2), each (B, T*hidden)."""
    B, T = y.shape
    H = hidden
    wih1, whh1, b1, w2, b2 = pack_params(params)

    kernel = functools.partial(_lstm_kernel, hidden=H, seq_len=T)
    full = lambda shape: pl.BlockSpec(shape, lambda i: (0,) * len(shape))

    out = pl.pallas_call(
        kernel,
        out_shape=jax.ShapeDtypeStruct((B, T * H), jnp.float32),
        grid_spec=pltpu.PrefetchScalarGridSpec(
            num_scalar_prefetch=0,
            grid=(1,),                 # single invocation; loop lives in-kernel
            in_specs=[
                full((B, T)),          # y (whole sequence resident)
                full((1, 4 * H)),      # W_ih1^T   (i,f,o,g)
                full((H, 4 * H)),      # W_hh1^T
                full((1, 4 * H)),      # b_ih1 + b_hh1
                full((2 * H, 4 * H)),  # [W_ih2^T; W_hh2^T] fused
                full((1, 4 * H)),      # b_ih2 + b_hh2
            ],
            out_specs=full((B, T * H)),
        ),
        compiler_params=pltpu.CompilerParams(
            dimension_semantics=("arbitrary",)),
    )(y, wih1, whh1, b1, w2, b2)

    # output1 and output2 are identical in the reference module; duplicate in
    # the wrapper rather than doubling kernel writeback.
    return out, out


# ----------------------- pure-JAX reference (for checking) -----------------------
def lstm_predictor_ref(y, params, *, hidden):
    B, T = y.shape
    H = hidden
    wih1, whh1, b1, wih2, whh2, b2 = params      # torch (i,f,g,o) layout
    h1 = c1 = h2 = c2 = jnp.zeros((B, H), jnp.float32)
    outs = []
    for t in range(T):
        x_t = y[:, t:t + 1]
        g1 = x_t @ wih1 + h1 @ whh1 + b1
        i1, f1, gg1, o1 = (jax.nn.sigmoid(g1[:, :H]), jax.nn.sigmoid(g1[:, H:2 * H]),
                           jnp.tanh(g1[:, 2 * H:3 * H]), jax.nn.sigmoid(g1[:, 3 * H:]))
        c1 = f1 * c1 + i1 * gg1
        h1 = o1 * jnp.tanh(c1)
        g2 = h1 @ wih2 + h2 @ whh2 + b2
        i2, f2, gg2, o2 = (jax.nn.sigmoid(g2[:, :H]), jax.nn.sigmoid(g2[:, H:2 * H]),
                           jnp.tanh(g2[:, 2 * H:3 * H]), jax.nn.sigmoid(g2[:, 3 * H:]))
        c2 = f2 * c2 + i2 * gg2
        h2 = o2 * jnp.tanh(c2)
        outs.append(_log_sigmoid(h2))
    out = jnp.concatenate(outs, axis=1)
    return out, out


def init_params(key, hidden):
    """PyTorch LSTMCell-style uniform(-1/sqrt(H), 1/sqrt(H)) init, in torch's
    (i,f,g,o) gate order.  Stored pre-transposed: W^T of shape (in, 4H),
    combined bias (1, 4H)."""
    H = hidden
    k = 1.0 / jnp.sqrt(jnp.float32(H))
    keys = jax.random.split(key, 8)
    u = lambda kk, shape: jax.random.uniform(kk, shape, jnp.float32, -k, k)
    wih1 = u(keys[0], (1, 4 * H))
    whh1 = u(keys[1], (H, 4 * H))
    b1 = (u(keys[2], (1, 4 * H)) + u(keys[3], (1, 4 * H)))
    wih2 = u(keys[4], (H, 4 * H))
    whh2 = u(keys[5], (H, 4 * H))
    b2 = (u(keys[6], (1, 4 * H)) + u(keys[7], (1, 4 * H)))
    return (wih1, whh1, b1, wih2, whh2, b2)


if __name__ == "__main__":
    B, T, H = 8, 8, 64   # batch, sequence length, n_hidden (module default 64)
    key = jax.random.PRNGKey(0)
    k_y, k_p = jax.random.split(key)
    y = jax.random.normal(k_y, (B, T), jnp.float32)
    params = init_params(k_p, H)

    out1, out2 = lstm_predictor(y, params, hidden=H)
    out1 = jax.block_until_ready(out1)
    out2 = jax.block_until_ready(out2)

    ref1, ref2 = lstm_predictor_ref(y, params, hidden=H)
    assert out1.shape == (B, T * H) and out2.shape == (B, T * H)
    assert jnp.allclose(out1, ref1, atol=1e-5, rtol=1e-5)
    assert jnp.allclose(out2, ref2, atol=1e-5, rtol=1e-5)
    print("KERNEL_OK")
</pallas_src>

<mosaic_0001>
module attributes {stable_mosaic.version = 11 : i64} {
  func.func @_lstm_kernel(%arg0: i32, %arg1: memref<8x8xf32, #tpu.memory_space<vmem>>, %arg2: memref<1x256xf32, #tpu.memory_space<vmem>>, %arg3: memref<64x256xf32, #tpu.memory_space<vmem>>, %arg4: memref<1x256xf32, #tpu.memory_space<vmem>>, %arg5: memref<128x256xf32, #tpu.memory_space<vmem>>, %arg6: memref<1x256xf32, #tpu.memory_space<vmem>>, %arg7: memref<8x512xf32, #tpu.memory_space<vmem>>) attributes {dimension_semantics = [#tpu.dimension_semantics<arbitrary>], iteration_bounds = array<i64: 1>, scalar_prefetch = 0 : i64, scratch_operands = 0 : i64, tpu.core_type = #tpu.core_type<tc>, window_params = [{pipeline_mode = #tpu.pipeline_mode<synchronous>, transform_indices = @transform_0, window_bounds = array<i64: 8, 8>}, {pipeline_mode = #tpu.pipeline_mode<synchronous>, transform_indices = @transform_1, window_bounds = array<i64: 1, 256>}, {pipeline_mode = #tpu.pipeline_mode<synchronous>, transform_indices = @transform_2, window_bounds = array<i64: 64, 256>}, {pipeline_mode = #tpu.pipeline_mode<synchronous>, transform_indices = @transform_3, window_bounds = array<i64: 1, 256>}, {pipeline_mode = #tpu.pipeline_mode<synchronous>, transform_indices = @transform_4, window_bounds = array<i64: 128, 256>}, {pipeline_mode = #tpu.pipeline_mode<synchronous>, transform_indices = @transform_5, window_bounds = array<i64: 1, 256>}, {pipeline_mode = #tpu.pipeline_mode<synchronous>, transform_indices = @transform_6, window_bounds = array<i64: 8, 512>}]} {
    %c0 = arith.constant 0 : index
    %c0_0 = arith.constant 0 : index
    %0 = vector.load %arg1[%c0, %c0_0] : memref<8x8xf32, #tpu.memory_space<vmem>>, vector<8x8xf32>
    %c0_1 = arith.constant 0 : index
    %c0_2 = arith.constant 0 : index
    %1 = vector.load %arg2[%c0_1, %c0_2] : memref<1x256xf32, #tpu.memory_space<vmem>>, vector<1x256xf32>
    %c0_3 = arith.constant 0 : index
    %c0_4 = arith.constant 0 : index
    %2 = vector.load %arg3[%c0_3, %c0_4] : memref<64x256xf32, #tpu.memory_space<vmem>>, vector<64x256xf32>
    %c0_5 = arith.constant 0 : index
    %c0_6 = arith.constant 0 : index
    %3 = vector.load %arg4[%c0_5, %c0_6] : memref<1x256xf32, #tpu.memory_space<vmem>>, vector<1x256xf32>
    %c0_7 = arith.constant 0 : index
    %c0_8 = arith.constant 0 : index
    %4 = vector.load %arg5[%c0_7, %c0_8] : memref<128x256xf32, #tpu.memory_space<vmem>>, vector<128x256xf32>
    %c0_9 = arith.constant 0 : index
    %c0_10 = arith.constant 0 : index
    %5 = vector.load %arg6[%c0_9, %c0_10] : memref<1x256xf32, #tpu.memory_space<vmem>>, vector<1x256xf32>
    %cst = arith.constant 0.000000e+00 : f32
    %6 = vector.broadcast %cst : f32 to vector<8x64xf32>
    %cst_11 = arith.constant 0.000000e+00 : f32
    %7 = vector.broadcast %cst_11 : f32 to vector<8x64xf32>
    %cst_12 = arith.constant 0.000000e+00 : f32
    %8 = vector.broadcast %cst_12 : f32 to vector<8x64xf32>
    %cst_13 = arith.constant 0.000000e+00 : f32
    %9 = vector.broadcast %cst_13 : f32 to vector<8x64xf32>
    %10 = vector.extract_strided_slice %0 {offsets = [0, 0], sizes = [8, 1], strides = [1, 1]} : vector<8x8xf32> to vector<8x1xf32>
    %11 = vector.broadcast %10 : vector<8x1xf32> to vector<8x256xf32>
    %12 = vector.broadcast %1 : vector<1x256xf32> to vector<8x256xf32>
    %13 = arith.mulf %11, %12 : vector<8x256xf32>
    %cst_14 = arith.constant dense<0.000000e+00> : vector<8x256xf32>
    %14 = tpu.matmul %6, %2, %cst_14 {dimension_numbers = #tpu.dot_dimension_numbers<[1], [0], [0], [1], [0, 0, 1, 1], [], []>} : vector<8x64xf32>, vector<64x256xf32>, vector<8x256xf32> -> vector<8x256xf32>
    %15 = arith.addf %13, %14 : vector<8x256xf32>
    %16 = vector.broadcast %3 : vector<1x256xf32> to vector<8x256xf32>
    %17 = arith.addf %15, %16 : vector<8x256xf32>
    %18 = vector.extract_strided_slice %17 {offsets = [0, 0], sizes = [8, 192], strides = [1, 1]} : vector<8x256xf32> to vector<8x192xf32>
    %19 = arith.negf %18 : vector<8x192xf32>
    %20 = math.exp %19 : vector<8x192xf32>
    %cst_15 = arith.constant 1.000000e+00 : f32
    %21 = vector.broadcast %cst_15 : f32 to vector<8x192xf32>
    %22 = arith.addf %21, %20 : vector<8x192xf32>
    %23 = arith.divf %21, %22 : vector<8x192xf32>
    %24 = vector.extract_strided_slice %17 {offsets = [0, 192], sizes = [8, 64], strides = [1, 1]} : vector<8x256xf32> to vector<8x64xf32>
    %25 = math.tanh %24 : vector<8x64xf32>
    %26 = vector.extract_strided_slice %23 {offsets = [0, 0], sizes = [8, 64], strides = [1, 1]} : vector<8x192xf32> to vector<8x64xf32>
    %27 = vector.extract_strided_slice %23 {offsets = [0, 64], sizes = [8, 64], strides = [1, 1]} : vector<8x192xf32> to vector<8x64xf32>
    %28 = vector.extract_strided_slice %23 {offsets = [0, 128], sizes = [8, 64], strides = [1, 1]} : vector<8x192xf32> to vector<8x64xf32>
    %29 = arith.mulf %27, %7 : vector<8x64xf32>
    %30 = arith.mulf %26, %25 : vector<8x64xf32>
    %31 = arith.addf %29, %30 : vector<8x64xf32>
    %32 = math.tanh %31 : vector<8x64xf32>
    %33 = arith.mulf %28, %32 : vector<8x64xf32>
    %34 = tpu.concatenate %33, %8 in 1 : vector<8x64xf32>, vector<8x64xf32> -> vector<8x128xf32>
    %cst_16 = arith.constant dense<0.000000e+00> : vector<8x256xf32>
    %35 = tpu.matmul %34, %4, %cst_16 {dimension_numbers = #tpu.dot_dimension_numbers<[1], [0], [0], [1], [0, 0, 1, 1], [], []>} : vector<8x128xf32>, vector<128x256xf32>, vector<8x256xf32> -> vector<8x256xf32>
    %36 = vector.broadcast %5 : vector<1x256xf32> to vector<8x256xf32>
    %37 = arith.addf %35, %36 : vector<8x256xf32>
    %38 = vector.extract_strided_slice %37 {offsets = [0, 0], sizes = [8, 192], strides = [1, 1]} : vector<8x256xf32> to vector<8x192xf32>
    %39 = arith.negf %38 : vector<8x192xf32>
    %40 = math.exp %39 : vector<8x192xf32>
    %cst_17 = arith.constant 1.000000e+00 : f32
    %41 = vector.broadcast %cst_17 : f32 to vector<8x192xf32>
    %42 = arith.addf %41, %40 : vector<8x192xf32>
    %43 = arith.divf %41, %42 : vector<8x192xf32>
    %44 = vector.extract_strided_slice %37 {offsets = [0, 192], sizes = [8, 64], strides = [1, 1]} : vector<8x256xf32> to vector<8x64xf32>
    %45 = math.tanh %44 : vector<8x64xf32>
    %46 = vector.extract_strided_slice %43 {offsets = [0, 0], sizes = [8, 64], strides = [1, 1]} : vector<8x192xf32> to vector<8x64xf32>
    %47 = vector.extract_strided_slice %43 {offsets = [0, 64], sizes = [8, 64], strides = [1, 1]} : vector<8x192xf32> to vector<8x64xf32>
    %48 = vector.extract_strided_slice %43 {offsets = [0, 128], sizes = [8, 64], strides = [1, 1]} : vector<8x192xf32> to vector<8x64xf32>
    %49 = arith.mulf %47, %9 : vector<8x64xf32>
    %50 = arith.mulf %46, %45 : vector<8x64xf32>
    %51 = arith.addf %49, %50 : vector<8x64xf32>
    %52 = math.tanh %51 : vector<8x64xf32>
    %53 = arith.mulf %48, %52 : vector<8x64xf32>
    %cst_18 = arith.constant 0.000000e+00 : f32
    %54 = vector.broadcast %cst_18 : f32 to vector<8x64xf32>
    %55 = arith.minimumf %53, %54 : vector<8x64xf32>
    %56 = math.absf %53 : vector<8x64xf32>
    %cst_19 = arith.constant 0.000000e+00 : f32
    %57 = vector.broadcast %cst_19 : f32 to vector<8x64xf32>
    %58 = arith.subf %57, %56 : vector<8x64xf32>
    %59 = math.exp %58 : vector<8x64xf32>
    %60 = math.log1p %59 : vector<8x64xf32>
    %61 = arith.subf %55, %60 : vector<8x64xf32>
    %62 = vector.extract_strided_slice %0 {offsets = [0, 1], sizes = [8, 1], strides = [1, 1]} : vector<8x8xf32> to vector<8x1xf32>
    %63 = vector.broadcast %62 : vector<8x1xf32> to vector<8x256xf32>
    %64 = vector.broadcast %1 : vector<1x256xf32> to vector<8x256xf32>
    %65 = arith.mulf %63, %64 : vector<8x256xf32>
    %cst_20 = arith.constant dense<0.000000e+00> : vector<8x256xf32>
    %66 = tpu.matmul %33, %2, %cst_20 {dimension_numbers = #tpu.dot_dimension_numbers<[1], [0], [0], [1], [0, 0, 1, 1], [], []>} : vector<8x64xf32>, vector<64x256xf32>, vector<8x256xf32> -> vector<8x256xf32>
    %67 = arith.addf %65, %66 : vector<8x256xf32>
    %68 = vector.broadcast %3 : vector<1x256xf32> to vector<8x256xf32>
    %69 = arith.addf %67, %68 : vector<8x256xf32>
    %70 = vector.extract_strided_slice %69 {offsets = [0, 0], sizes = [8, 192], strides = [1, 1]} : vector<8x256xf32> to vector<8x192xf32>
    %71 = arith.negf %70 : vector<8x192xf32>
    %72 = math.exp %71 : vector<8x192xf32>
    %cst_21 = arith.constant 1.000000e+00 : f32
    %73 = vector.broadcast %cst_21 : f32 to vector<8x192xf32>
    %74 = arith.addf %73, %72 : vector<8x192xf32>
    %75 = arith.divf %73, %74 : vector<8x192xf32>
    %76 = vector.extract_strided_slice %69 {offsets = [0, 192], sizes = [8, 64], strides = [1, 1]} : vector<8x256xf32> to vector<8x64xf32>
    %77 = math.tanh %76 : vector<8x64xf32>
    %78 = vector.extract_strided_slice %75 {offsets = [0, 0], sizes = [8, 64], strides = [1, 1]} : vector<8x192xf32> to vector<8x64xf32>
    %79 = vector.extract_strided_slice %75 {offsets = [0, 64], sizes = [8, 64], strides = [1, 1]} : vector<8x192xf32> to vector<8x64xf32>
    %80 = vector.extract_strided_slice %75 {offsets = [0, 128], sizes = [8, 64], strides = [1, 1]} : vector<8x192xf32> to vector<8x64xf32>
    %81 = arith.mulf %79, %31 : vector<8x64xf32>
    %82 = arith.mulf %78, %77 : vector<8x64xf32>
    %83 = arith.addf %81, %82 : vector<8x64xf32>
    %84 = math.tanh %83 : vector<8x64xf32>
    %85 = arith.mulf %80, %84 : vector<8x64xf32>
    %86 = tpu.concatenate %85, %53 in 1 : vector<8x64xf32>, vector<8x64xf32> -> vector<8x128xf32>
    %cst_22 = arith.constant dense<0.000000e+00> : vector<8x256xf32>
    %87 = tpu.matmul %86, %4, %cst_22 {dimension_numbers = #tpu.dot_dimension_numbers<[1], [0], [0], [1], [0, 0, 1, 1], [], []>} : vector<8x128xf32>, vector<128x256xf32>, vector<8x256xf32> -> vector<8x256xf32>
    %88 = vector.broadcast %5 : vector<1x256xf32> to vector<8x256xf32>
    %89 = arith.addf %87, %88 : vector<8x256xf32>
    %90 = vector.extract_strided_slice %89 {offsets = [0, 0], sizes = [8, 192], strides = [1, 1]} : vector<8x256xf32> to vector<8x192xf32>
    %91 = arith.negf %90 : vector<8x192xf32>
    %92 = math.exp %91 : vector<8x192xf32>
    %cst_23 = arith.constant 1.000000e+00 : f32
    %93 = vector.broadcast %cst_23 : f32 to vector<8x192xf32>
    %94 = arith.addf %93, %92 : vector<8x192xf32>
    %95 = arith.divf %93, %94 : vector<8x192xf32>
    %96 = vector.extract_strided_slice %89 {offsets = [0, 192], sizes = [8, 64], strides = [1, 1]} : vector<8x256xf32> to vector<8x64xf32>
    %97 = math.tanh %96 : vector<8x64xf32>
    %98 = vector.extract_strided_slice %95 {offsets = [0, 0], sizes = [8, 64], strides = [1, 1]} : vector<8x192xf32> to vector<8x64xf32>
    %99 = vector.extract_strided_slice %95 {offsets = [0, 64], sizes = [8, 64], strides = [1, 1]} : vector<8x192xf32> to vector<8x64xf32>
    %100 = vector.extract_strided_slice %95 {offsets = [0, 128], sizes = [8, 64], strides = [1, 1]} : vector<8x192xf32> to vector<8x64xf32>
    %101 = arith.mulf %99, %51 : vector<8x64xf32>
    %102 = arith.mulf %98, %97 : vector<8x64xf32>
    %103 = arith.addf %101, %102 : vector<8x64xf32>
    %104 = math.tanh %103 : vector<8x64xf32>
    %105 = arith.mulf %100, %104 : vector<8x64xf32>
    %cst_24 = arith.constant 0.000000e+00 : f32
    %106 = vector.broadcast %cst_24 : f32 to vector<8x64xf32>
    %107 = arith.minimumf %105, %106 : vector<8x64xf32>
    %108 = math.absf %105 : vector<8x64xf32>
    %cst_25 = arith.constant 0.000000e+00 : f32
    %109 = vector.broadcast %cst_25 : f32 to vector<8x64xf32>
    %110 = arith.subf %109, %108 : vector<8x64xf32>
    %111 = math.exp %110 : vector<8x64xf32>
    %112 = math.log1p %111 : vector<8x64xf32>
    %113 = arith.subf %107, %112 : vector<8x64xf32>
    %114 = vector.extract_strided_slice %0 {offsets = [0, 2], sizes = [8, 1], strides = [1, 1]} : vector<8x8xf32> to vector<8x1xf32>
    %115 = vector.broadcast %114 : vector<8x1xf32> to vector<8x256xf32>
    %116 = vector.broadcast %1 : vector<1x256xf32> to vector<8x256xf32>
    %117 = arith.mulf %115, %116 : vector<8x256xf32>
    %cst_26 = arith.constant dense<0.000000e+00> : vector<8x256xf32>
    %118 = tpu.matmul %85, %2, %cst_26 {dimension_numbers = #tpu.dot_dimension_numbers<[1], [0], [0], [1], [0, 0, 1, 1], [], []>} : vector<8x64xf32>, vector<64x256xf32>, vector<8x256xf32> -> vector<8x256xf32>
    %119 = arith.addf %117, %118 : vector<8x256xf32>
    %120 = vector.broadcast %3 : vector<1x256xf32> to vector<8x256xf32>
    %121 = arith.addf %119, %120 : vector<8x256xf32>
    %122 = vector.extract_strided_slice %121 {offsets = [0, 0], sizes = [8, 192], strides = [1, 1]} : vector<8x256xf32> to vector<8x192xf32>
    %123 = arith.negf %122 : vector<8x192xf32>
    %124 = math.exp %123 : vector<8x192xf32>
    %cst_27 = arith.constant 1.000000e+00 : f32
    %125 = vector.broadcast %cst_27 : f32 to vector<8x192xf32>
    %126 = arith.addf %125, %124 : vector<8x192xf32>
    %127 = arith.divf %125, %126 : vector<8x192xf32>
    %128 = vector.extract_strided_slice %121 {offsets = [0, 192], sizes = [8, 64], strides = [1, 1]} : vector<8x256xf32> to vector<8x64xf32>
    %129 = math.tanh %128 : vector<8x64xf32>
    %130 = vector.extract_strided_slice %127 {offsets = [0, 0], sizes = [8, 64], strides = [1, 1]} : vector<8x192xf32> to vector<8x64xf32>
    %131 = vector.extract_strided_slice %127 {offsets = [0, 64], sizes = [8, 64], strides = [1, 1]} : vector<8x192xf32> to vector<8x64xf32>
    %132 = vector.extract_strided_slice %127 {offsets = [0, 128], sizes = [8, 64], strides = [1, 1]} : vector<8x192xf32> to vector<8x64xf32>
    %133 = arith.mulf %131, %83 : vector<8x64xf32>
    %134 = arith.mulf %130, %129 : vector<8x64xf32>
    %135 = arith.addf %133, %134 : vector<8x64xf32>
    %136 = math.tanh %135 : vector<8x64xf32>
    %137 = arith.mulf %132, %136 : vector<8x64xf32>
    %138 = tpu.concatenate %137, %105 in 1 : vector<8x64xf32>, vector<8x64xf32> -> vector<8x128xf32>
    %cst_28 = arith.constant dense<0.000000e+00> : vector<8x256xf32>
    %139 = tpu.matmul %138, %4, %cst_28 {dimension_numbers = #tpu.dot_dimension_numbers<[1], [0], [0], [1], [0, 0, 1, 1], [], []>} : vector<8x128xf32>, vector<128x256xf32>, vector<8x256xf32> -> vector<8x256xf32>
    %140 = vector.broadcast %5 : vector<1x256xf32> to vector<8x256xf32>
    %141 = arith.addf %139, %140 : vector<8x256xf32>
    %142 = vector.extract_strided_slice %141 {offsets = [0, 0], sizes = [8, 192], strides = [1, 1]} : vector<8x256xf32> to vector<8x192xf32>
    %143 = arith.negf %142 : vector<8x192xf32>
    %144 = math.exp %143 : vector<8x192xf32>
    %cst_29 = arith.constant 1.000000e+00 : f32
    %145 = vector.broadcast %cst_29 : f32 to vector<8x192xf32>
    %146 = arith.addf %145, %144 : vector<8x192xf32>
    %147 = arith.divf %145, %146 : vector<8x192xf32>
    %148 = vector.extract_strided_slice %141 {offsets = [0, 192], sizes = [8, 64], strides = [1, 1]} : vector<8x256xf32> to vector<8x64xf32>
    %149 = math.tanh %148 : vector<8x64xf32>
    %150 = vector.extract_strided_slice %147 {offsets = [0, 0], sizes = [8, 64], strides = [1, 1]} : vector<8x192xf32> to vector<8x64xf32>
    %151 = vector.extract_strided_slice %147 {offsets = [0, 64], sizes = [8, 64], strides = [1, 1]} : vector<8x192xf32> to vector<8x64xf32>
    %152 = vector.extract_strided_slice %147 {offsets = [0, 128], sizes = [8, 64], strides = [1, 1]} : vector<8x192xf32> to vector<8x64xf32>
    %153 = arith.mulf %151, %103 : vector<8x64xf32>
    %154 = arith.mulf %150, %149 : vector<8x64xf32>
    %155 = arith.addf %153, %154 : vector<8x64xf32>
    %156 = math.tanh %155 : vector<8x64xf32>
    %157 = arith.mulf %152, %156 : vector<8x64xf32>
    %cst_30 = arith.constant 0.000000e+00 : f32
    %158 = vector.broadcast %cst_30 : f32 to vector<8x64xf32>
    %159 = arith.minimumf %157, %158 : vector<8x64xf32>
    %160 = math.absf %157 : vector<8x64xf32>
    %cst_31 = arith.constant 0.000000e+00 : f32
    %161 = vector.broadcast %cst_31 : f32 to vector<8x64xf32>
    %162 = arith.subf %161, %160 : vector<8x64xf32>
    %163 = math.exp %162 : vector<8x64xf32>
    %164 = math.log1p %163 : vector<8x64xf32>
    %165 = arith.subf %159, %164 : vector<8x64xf32>
    %166 = vector.extract_strided_slice %0 {offsets = [0, 3], sizes = [8, 1], strides = [1, 1]} : vector<8x8xf32> to vector<8x1xf32>
    %167 = vector.broadcast %166 : vector<8x1xf32> to vector<8x256xf32>
    %168 = vector.broadcast %1 : vector<1x256xf32> to vector<8x256xf32>
    %169 = arith.mulf %167, %168 : vector<8x256xf32>
    %cst_32 = arith.constant dense<0.000000e+00> : vector<8x256xf32>
    %170 = tpu.matmul %137, %2, %cst_32 {dimension_numbers = #tpu.dot_dimension_numbers<[1], [0], [0], [1], [0, 0, 1, 1], [], []>} : vector<8x64xf32>, vector<64x256xf32>, vector<8x256xf32> -> vector<8x256xf32>
    %171 = arith.addf %169, %170 : vector<8x256xf32>
    %172 = vector.broadcast %3 : vector<1x256xf32> to vector<8x256xf32>
    %173 = arith.addf %171, %172 : vector<8x256xf32>
    %174 = vector.extract_strided_slice %173 {offsets = [0, 0], sizes = [8, 192], strides = [1, 1]} : vector<8x256xf32> to vector<8x192xf32>
    %175 = arith.negf %174 : vector<8x192xf32>
    %176 = math.exp %175 : vector<8x192xf32>
    %cst_33 = arith.constant 1.000000e+00 : f32
    %177 = vector.broadcast %cst_33 : f32 to vector<8x192xf32>
    %178 = arith.addf %177, %176 : vector<8x192xf32>
    %179 = arith.divf %177, %178 : vector<8x192xf32>
    %180 = vector.extract_strided_slice %173 {offsets = [0, 192], sizes = [8, 64], strides = [1, 1]} : vector<8x256xf32> to vector<8x64xf32>
    %181 = math.tanh %180 : vector<8x64xf32>
    %182 = vector.extract_strided_slice %179 {offsets = [0, 0], sizes = [8, 64], strides = [1, 1]} : vector<8x192xf32> to vector<8x64xf32>
    %183 = vector.extract_strided_slice %179 {offsets = [0, 64], sizes = [8, 64], strides = [1, 1]} : vector<8x192xf32> to vector<8x64xf32>
    %184 = vector.extract_strided_slice %179 {offsets = [0, 128], sizes = [8, 64], strides = [1, 1]} : vector<8x192xf32> to vector<8x64xf32>
    %185 = arith.mulf %183, %135 : vector<8x64xf32>
    %186 = arith.mulf %182, %181 : vector<8x64xf32>
    %187 = arith.addf %185, %186 : vector<8x64xf32>
    %188 = math.tanh %187 : vector<8x64xf32>
    %189 = arith.mulf %184, %188 : vector<8x64xf32>
    %190 = tpu.concatenate %189, %157 in 1 : vector<8x64xf32>, vector<8x64xf32> -> vector<8x128xf32>
    %cst_34 = arith.constant dense<0.000000e+00> : vector<8x256xf32>
    %191 = tpu.matmul %190, %4, %cst_34 {dimension_numbers = #tpu.dot_dimension_numbers<[1], [0], [0], [1], [0, 0, 1, 1], [], []>} : vector<8x128xf32>, vector<128x256xf32>, vector<8x256xf32> -> vector<8x256xf32>
    %192 = vector.broadcast %5 : vector<1x256xf32> to vector<8x256xf32>
    %193 = arith.addf %191, %192 : vector<8x256xf32>
    %194 = vector.extract_strided_slice %193 {offsets = [0, 0], sizes = [8, 192], strides = [1, 1]} : vector<8x256xf32> to vector<8x192xf32>
    %195 = arith.negf %194 : vector<8x192xf32>
    %196 = math.exp %195 : vector<8x192xf32>
    %cst_35 = arith.constant 1.000000e+00 : f32
    %197 = vector.broadcast %cst_35 : f32 to vector<8x192xf32>
    %198 = arith.addf %197, %196 : vector<8x192xf32>
    %199 = arith.divf %197, %198 : vector<8x192xf32>
    %200 = vector.extract_strided_slice %193 {offsets = [0, 192], sizes = [8, 64], strides = [1, 1]} : vector<8x256xf32> to vector<8x64xf32>
    %201 = math.tanh %200 : vector<8x64xf32>
    %202 = vector.extract_strided_slice %199 {offsets = [0, 0], sizes = [8, 64], strides = [1, 1]} : vector<8x192xf32> to vector<8x64xf32>
    %203 = vector.extract_strided_slice %199 {offsets = [0, 64], sizes = [8, 64], strides = [1, 1]} : vector<8x192xf32> to vector<8x64xf32>
    %204 = vector.extract_strided_slice %199 {offsets = [0, 128], sizes = [8, 64], strides = [1, 1]} : vector<8x192xf32> to vector<8x64xf32>
    %205 = arith.mulf %203, %155 : vector<8x64xf32>
    %206 = arith.mulf %202, %201 : vector<8x64xf32>
    %207 = arith.addf %205, %206 : vector<8x64xf32>
    %208 = math.tanh %207 : vector<8x64xf32>
    %209 = arith.mulf %204, %208 : vector<8x64xf32>
    %cst_36 = arith.constant 0.000000e+00 : f32
    %210 = vector.broadcast %cst_36 : f32 to vector<8x64xf32>
    %211 = arith.minimumf %209, %210 : vector<8x64xf32>
    %212 = math.absf %209 : vector<8x64xf32>
    %cst_37 = arith.constant 0.000000e+00 : f32
    %213 = vector.broadcast %cst_37 : f32 to vector<8x64xf32>
    %214 = arith.subf %213, %212 : vector<8x64xf32>
    %215 = math.exp %214 : vector<8x64xf32>
    %216 = math.log1p %215 : vector<8x64xf32>
    %217 = arith.subf %211, %216 : vector<8x64xf32>
    %218 = vector.extract_strided_slice %0 {offsets = [0, 4], sizes = [8, 1], strides = [1, 1]} : vector<8x8xf32> to vector<8x1xf32>
    %219 = vector.broadcast %218 : vector<8x1xf32> to vector<8x256xf32>
    %220 = vector.broadcast %1 : vector<1x256xf32> to vector<8x256xf32>
    %221 = arith.mulf %219, %220 : vector<8x256xf32>
    %cst_38 = arith.constant dense<0.000000e+00> : vector<8x256xf32>
    %222 = tpu.matmul %189, %2, %cst_38 {dimension_numbers = #tpu.dot_dimension_numbers<[1], [0], [0], [1], [0, 0, 1, 1], [], []>} : vector<8x64xf32>, vector<64x256xf32>, vector<8x256xf32> -> vector<8x256xf32>
    %223 = arith.addf %221, %222 : vector<8x256xf32>
    %224 = vector.broadcast %3 : vector<1x256xf32> to vector<8x256xf32>
    %225 = arith.addf %223, %224 : vector<8x256xf32>
    %226 = vector.extract_strided_slice %225 {offsets = [0, 0], sizes = [8, 192], strides = [1, 1]} : vector<8x256xf32> to vector<8x192xf32>
    %227 = arith.negf %226 : vector<8x192xf32>
    %228 = math.exp %227 : vector<8x192xf32>
    %cst_39 = arith.constant 1.000000e+00 : f32
    %229 = vector.broadcast %cst_39 : f32 to vector<8x192xf32>
    %230 = arith.addf %229, %228 : vector<8x192xf32>
    %231 = arith.divf %229, %230 : vector<8x192xf32>
    %232 = vector.extract_strided_slice %225 {offsets = [0, 192], sizes = [8, 64], strides = [1, 1]} : vector<8x256xf32> to vector<8x64xf32>
    %233 = math.tanh %232 : vector<8x64xf32>
    %234 = vector.extract_strided_slice %231 {offsets = [0, 0], sizes = [8, 64], strides = [1, 1]} : vector<8x192xf32> to vector<8x64xf32>
    %235 = vector.extract_strided_slice %231 {offsets = [0, 64], sizes = [8, 64], strides = [1, 1]} : vector<8x192xf32> to vector<8x64xf32>
    %236 = vector.extract_strided_slice %231 {offsets = [0, 128], sizes = [8, 64], strides = [1, 1]} : vector<8x192xf32> to vector<8x64xf32>
    %237 = arith.mulf %235, %187 : vector<8x64xf32>
    %238 = arith.mulf %234, %233 : vector<8x64xf32>
    %239 = arith.addf %237, %238 : vector<8x64xf32>
    %240 = math.tanh %239 : vector<8x64xf32>
    %241 = arith.mulf %236, %240 : vector<8x64xf32>
    %242 = tpu.concatenate %241, %209 in 1 : vector<8x64xf32>, vector<8x64xf32> -> vector<8x128xf32>
    %cst_40 = arith.constant dense<0.000000e+00> : vector<8x256xf32>
    %243 = tpu.matmul %242, %4, %cst_40 {dimension_numbers = #tpu.dot_dimension_numbers<[1], [0], [0], [1], [0, 0, 1, 1], [], []>} : vector<8x128xf32>, vector<128x256xf32>, vector<8x256xf32> -> vector<8x256xf32>
    %244 = vector.broadcast %5 : vector<1x256xf32> to vector<8x256xf32>
    %245 = arith.addf %243, %244 : vector<8x256xf32>
    %246 = vector.extract_strided_slice %245 {offsets = [0, 0], sizes = [8, 192], strides = [1, 1]} : vector<8x256xf32> to vector<8x192xf32>
    %247 = arith.negf %246 : vector<8x192xf32>
    %248 = math.exp %247 : vector<8x192xf32>
    %cst_41 = arith.constant 1.000000e+00 : f32
    %249 = vector.broadcast %cst_41 : f32 to vector<8x192xf32>
    %250 = arith.addf %249, %248 : vector<8x192xf32>
    %251 = arith.divf %249, %250 : vector<8x192xf32>
    %252 = vector.extract_strided_slice %245 {offsets = [0, 192], sizes = [8, 64], strides = [1, 1]} : vector<8x256xf32> to vector<8x64xf32>
    %253 = math.tanh %252 : vector<8x64xf32>
    %254 = vector.extract_strided_slice %251 {offsets = [0, 0], sizes = [8, 64], strides = [1, 1]} : vector<8x192xf32> to vector<8x64xf32>
    %255 = vector.extract_strided_slice %251 {offsets = [0, 64], sizes = [8, 64], strides = [1, 1]} : vector<8x192xf32> to vector<8x64xf32>
    %256 = vector.extract_strided_slice %251 {offsets = [0, 128], sizes = [8, 64], strides = [1, 1]} : vector<8x192xf32> to vector<8x64xf32>
    %257 = arith.mulf %255, %207 : vector<8x64xf32>
    %258 = arith.mulf %254, %253 : vector<8x64xf32>
    %259 = arith.addf %257, %258 : vector<8x64xf32>
    %260 = math.tanh %259 : vector<8x64xf32>
    %261 = arith.mulf %256, %260 : vector<8x64xf32>
    %cst_42 = arith.constant 0.000000e+00 : f32
    %262 = vector.broadcast %cst_42 : f32 to vector<8x64xf32>
    %263 = arith.minimumf %261, %262 : vector<8x64xf32>
    %264 = math.absf %261 : vector<8x64xf32>
    %cst_43 = arith.constant 0.000000e+00 : f32
    %265 = vector.broadcast %cst_43 : f32 to vector<8x64xf32>
    %266 = arith.subf %265, %264 : vector<8x64xf32>
    %267 = math.exp %266 : vector<8x64xf32>
    %268 = math.log1p %267 : vector<8x64xf32>
    %269 = arith.subf %263, %268 : vector<8x64xf32>
    %270 = vector.extract_strided_slice %0 {offsets = [0, 5], sizes = [8, 1], strides = [1, 1]} : vector<8x8xf32> to vector<8x1xf32>
    %271 = vector.broadcast %270 : vector<8x1xf32> to vector<8x256xf32>
    %272 = vector.broadcast %1 : vector<1x256xf32> to vector<8x256xf32>
    %273 = arith.mulf %271, %272 : vector<8x256xf32>
    %cst_44 = arith.constant dense<0.000000e+00> : vector<8x256xf32>
    %274 = tpu.matmul %241, %2, %cst_44 {dimension_numbers = #tpu.dot_dimension_numbers<[1], [0], [0], [1], [0, 0, 1, 1], [], []>} : vector<8x64xf32>, vector<64x256xf32>, vector<8x256xf32> -> vector<8x256xf32>
    %275 = arith.addf %273, %274 : vector<8x256xf32>
    %276 = vector.broadcast %3 : vector<1x256xf32> to vector<8x256xf32>
    %277 = arith.addf %275, %276 : vector<8x256xf32>
    %278 = vector.extract_strided_slice %277 {offsets = [0, 0], sizes = [8, 192], strides = [1, 1]} : vector<8x256xf32> to vector<8x192xf32>
    %279 = arith.negf %278 : vector<8x192xf32>
    %280 = math.exp %279 : vector<8x192xf32>
    %cst_45 = arith.constant 1.000000e+00 : f32
    %281 = vector.broadcast %cst_45 : f32 to vector<8x192xf32>
    %282 = arith.addf %281, %280 : vector<8x192xf32>
    %283 = arith.divf %281, %282 : vector<8x192xf32>
    %284 = vector.extract_strided_slice %277 {offsets = [0, 192], sizes = [8, 64], strides = [1, 1]} : vector<8x256xf32> to vector<8x64xf32>
    %285 = math.tanh %284 : vector<8x64xf32>
    %286 = vector.extract_strided_slice %283 {offsets = [0, 0], sizes = [8, 64], strides = [1, 1]} : vector<8x192xf32> to vector<8x64xf32>
    %287 = vector.extract_strided_slice %283 {offsets = [0, 64], sizes = [8, 64], strides = [1, 1]} : vector<8x192xf32> to vector<8x64xf32>
    %288 = vector.extract_strided_slice %283 {offsets = [0, 128], sizes = [8, 64], strides = [1, 1]} : vector<8x192xf32> to vector<8x64xf32>
    %289 = arith.mulf %287, %239 : vector<8x64xf32>
    %290 = arith.mulf %286, %285 : vector<8x64xf32>
    %291 = arith.addf %289, %290 : vector<8x64xf32>
    %292 = math.tanh %291 : vector<8x64xf32>
    %293 = arith.mulf %288, %292 : vector<8x64xf32>
    %294 = tpu.concatenate %293, %261 in 1 : vector<8x64xf32>, vector<8x64xf32> -> vector<8x128xf32>
    %cst_46 = arith.constant dense<0.000000e+00> : vector<8x256xf32>
    %295 = tpu.matmul %294, %4, %cst_46 {dimension_numbers = #tpu.dot_dimension_numbers<[1], [0], [0], [1], [0, 0, 1, 1], [], []>} : vector<8x128xf32>, vector<128x256xf32>, vector<8x256xf32> -> vector<8x256xf32>
    %296 = vector.broadcast %5 : vector<1x256xf32> to vector<8x256xf32>
    %297 = arith.addf %295, %296 : vector<8x256xf32>
    %298 = vector.extract_strided_slice %297 {offsets = [0, 0], sizes = [8, 192], strides = [1, 1]} : vector<8x256xf32> to vector<8x192xf32>
    %299 = arith.negf %298 : vector<8x192xf32>
    %300 = math.exp %299 : vector<8x192xf32>
    %cst_47 = arith.constant 1.000000e+00 : f32
    %301 = vector.broadcast %cst_47 : f32 to vector<8x192xf32>
    %302 = arith.addf %301, %300 : vector<8x192xf32>
    %303 = arith.divf %301, %302 : vector<8x192xf32>
    %304 = vector.extract_strided_slice %297 {offsets = [0, 192], sizes = [8, 64], strides = [1, 1]} : vector<8x256xf32> to vector<8x64xf32>
    %305 = math.tanh %304 : vector<8x64xf32>
    %306 = vector.extract_strided_slice %303 {offsets = [0, 0], sizes = [8, 64], strides = [1, 1]} : vector<8x192xf32> to vector<8x64xf32>
    %307 = vector.extract_strided_slice %303 {offsets = [0, 64], sizes = [8, 64], strides = [1, 1]} : vector<8x192xf32> to vector<8x64xf32>
    %308 = vector.extract_strided_slice %303 {offsets = [0, 128], sizes = [8, 64], strides = [1, 1]} : vector<8x192xf32> to vector<8x64xf32>
    %309 = arith.mulf %307, %259 : vector<8x64xf32>
    %310 = arith.mulf %306, %305 : vector<8x64xf32>
    %311 = arith.addf %309, %310 : vector<8x64xf32>
    %312 = math.tanh %311 : vector<8x64xf32>
    %313 = arith.mulf %308, %312 : vector<8x64xf32>
    %cst_48 = arith.constant 0.000000e+00 : f32
    %314 = vector.broadcast %cst_48 : f32 to vector<8x64xf32>
    %315 = arith.minimumf %313, %314 : vector<8x64xf32>
    %316 = math.absf %313 : vector<8x64xf32>
    %cst_49 = arith.constant 0.000000e+00 : f32
    %317 = vector.broadcast %cst_49 : f32 to vector<8x64xf32>
    %318 = arith.subf %317, %316 : vector<8x64xf32>
    %319 = math.exp %318 : vector<8x64xf32>
    %320 = math.log1p %319 : vector<8x64xf32>
    %321 = arith.subf %315, %320 : vector<8x64xf32>
    %322 = vector.extract_strided_slice %0 {offsets = [0, 6], sizes = [8, 1], strides = [1, 1]} : vector<8x8xf32> to vector<8x1xf32>
    %323 = vector.broadcast %322 : vector<8x1xf32> to vector<8x256xf32>
    %324 = vector.broadcast %1 : vector<1x256xf32> to vector<8x256xf32>
    %325 = arith.mulf %323, %324 : vector<8x256xf32>
    %cst_50 = arith.constant dense<0.000000e+00> : vector<8x256xf32>
    %326 = tpu.matmul %293, %2, %cst_50 {dimension_numbers = #tpu.dot_dimension_numbers<[1], [0], [0], [1], [0, 0, 1, 1], [], []>} : vector<8x64xf32>, vector<64x256xf32>, vector<8x256xf32> -> vector<8x256xf32>
    %327 = arith.addf %325, %326 : vector<8x256xf32>
    %328 = vector.broadcast %3 : vector<1x256xf32> to vector<8x256xf32>
    %329 = arith.addf %327, %328 : vector<8x256xf32>
    %330 = vector.extract_strided_slice %329 {offsets = [0, 0], sizes = [8, 192], strides = [1, 1]} : vector<8x256xf32> to vector<8x192xf32>
    %331 = arith.negf %330 : vector<8x192xf32>
    %332 = math.exp %331 : vector<8x192xf32>
    %cst_51 = arith.constant 1.000000e+00 : f32
    %333 = vector.broadcast %cst_51 : f32 to vector<8x192xf32>
    %334 = arith.addf %333, %332 : vector<8x192xf32>
    %335 = arith.divf %333, %334 : vector<8x192xf32>
    %336 = vector.extract_strided_slice %329 {offsets = [0, 192], sizes = [8, 64], strides = [1, 1]} : vector<8x256xf32> to vector<8x64xf32>
    %337 = math.tanh %336 : vector<8x64xf32>
    %338 = vector.extract_strided_slice %335 {offsets = [0, 0], sizes = [8, 64], strides = [1, 1]} : vector<8x192xf32> to vector<8x64xf32>
    %339 = vector.extract_strided_slice %335 {offsets = [0, 64], sizes = [8, 64], strides = [1, 1]} : vector<8x192xf32> to vector<8x64xf32>
    %340 = vector.extract_strided_slice %335 {offsets = [0, 128], sizes = [8, 64], strides = [1, 1]} : vector<8x192xf32> to vector<8x64xf32>
    %341 = arith.mulf %339, %291 : vector<8x64xf32>
    %342 = arith.mulf %338, %337 : vector<8x64xf32>
    %343 = arith.addf %341, %342 : vector<8x64xf32>
    %344 = math.tanh %343 : vector<8x64xf32>
    %345 = arith.mulf %340, %344 : vector<8x64xf32>
    %346 = tpu.concatenate %345, %313 in 1 : vector<8x64xf32>, vector<8x64xf32> -> vector<8x128xf32>
    %cst_52 = arith.constant dense<0.000000e+00> : vector<8x256xf32>
    %347 = tpu.matmul %346, %4, %cst_52 {dimension_numbers = #tpu.dot_dimension_numbers<[1], [0], [0], [1], [0, 0, 1, 1], [], []>} : vector<8x128xf32>, vector<128x256xf32>, vector<8x256xf32> -> vector<8x256xf32>
    %348 = vector.broadcast %5 : vector<1x256xf32> to vector<8x256xf32>
    %349 = arith.addf %347, %348 : vector<8x256xf32>
    %350 = vector.extract_strided_slice %349 {offsets = [0, 0], sizes = [8, 192], strides = [1, 1]} : vector<8x256xf32> to vector<8x192xf32>
    %351 = arith.negf %350 : vector<8x192xf32>
    %352 = math.exp %351 : vector<8x192xf32>
    %cst_53 = arith.constant 1.000000e+00 : f32
    %353 = vector.broadcast %cst_53 : f32 to vector<8x192xf32>
    %354 = arith.addf %353, %352 : vector<8x192xf32>
    %355 = arith.divf %353, %354 : vector<8x192xf32>
    %356 = vector.extract_strided_slice %349 {offsets = [0, 192], sizes = [8, 64], strides = [1, 1]} : vector<8x256xf32> to vector<8x64xf32>
    %357 = math.tanh %356 : vector<8x64xf32>
    %358 = vector.extract_strided_slice %355 {offsets = [0, 0], sizes = [8, 64], strides = [1, 1]} : vector<8x192xf32> to vector<8x64xf32>
    %359 = vector.extract_strided_slice %355 {offsets = [0, 64], sizes = [8, 64], strides = [1, 1]} : vector<8x192xf32> to vector<8x64xf32>
    %360 = vector.extract_strided_slice %355 {offsets = [0, 128], sizes = [8, 64], strides = [1, 1]} : vector<8x192xf32> to vector<8x64xf32>
    %361 = arith.mulf %359, %311 : vector<8x64xf32>
    %362 = arith.mulf %358, %357 : vector<8x64xf32>
    %363 = arith.addf %361, %362 : vector<8x64xf32>
    %364 = math.tanh %363 : vector<8x64xf32>
    %365 = arith.mulf %360, %364 : vector<8x64xf32>
    %cst_54 = arith.constant 0.000000e+00 : f32
    %366 = vector.broadcast %cst_54 : f32 to vector<8x64xf32>
    %367 = arith.minimumf %365, %366 : vector<8x64xf32>
    %368 = math.absf %365 : vector<8x64xf32>
    %cst_55 = arith.constant 0.000000e+00 : f32
    %369 = vector.broadcast %cst_55 : f32 to vector<8x64xf32>
    %370 = arith.subf %369, %368 : vector<8x64xf32>
    %371 = math.exp %370 : vector<8x64xf32>
    %372 = math.log1p %371 : vector<8x64xf32>
    %373 = arith.subf %367, %372 : vector<8x64xf32>
    %374 = vector.extract_strided_slice %0 {offsets = [0, 7], sizes = [8, 1], strides = [1, 1]} : vector<8x8xf32> to vector<8x1xf32>
    %375 = vector.broadcast %374 : vector<8x1xf32> to vector<8x256xf32>
    %376 = vector.broadcast %1 : vector<1x256xf32> to vector<8x256xf32>
    %377 = arith.mulf %375, %376 : vector<8x256xf32>
    %cst_56 = arith.constant dense<0.000000e+00> : vector<8x256xf32>
    %378 = tpu.matmul %345, %2, %cst_56 {dimension_numbers = #tpu.dot_dimension_numbers<[1], [0], [0], [1], [0, 0, 1, 1], [], []>} : vector<8x64xf32>, vector<64x256xf32>, vector<8x256xf32> -> vector<8x256xf32>
    %379 = arith.addf %377, %378 : vector<8x256xf32>
    %380 = vector.broadcast %3 : vector<1x256xf32> to vector<8x256xf32>
    %381 = arith.addf %379, %380 : vector<8x256xf32>
    %382 = vector.extract_strided_slice %381 {offsets = [0, 0], sizes = [8, 192], strides = [1, 1]} : vector<8x256xf32> to vector<8x192xf32>
    %383 = arith.negf %382 : vector<8x192xf32>
    %384 = math.exp %383 : vector<8x192xf32>
    %cst_57 = arith.constant 1.000000e+00 : f32
    %385 = vector.broadcast %cst_57 : f32 to vector<8x192xf32>
    %386 = arith.addf %385, %384 : vector<8x192xf32>
    %387 = arith.divf %385, %386 : vector<8x192xf32>
    %388 = vector.extract_strided_slice %381 {offsets = [0, 192], sizes = [8, 64], strides = [1, 1]} : vector<8x256xf32> to vector<8x64xf32>
    %389 = math.tanh %388 : vector<8x64xf32>
    %390 = vector.extract_strided_slice %387 {offsets = [0, 0], sizes = [8, 64], strides = [1, 1]} : vector<8x192xf32> to vector<8x64xf32>
    %391 = vector.extract_strided_slice %387 {offsets = [0, 64], sizes = [8, 64], strides = [1, 1]} : vector<8x192xf32> to vector<8x64xf32>
    %392 = vector.extract_strided_slice %387 {offsets = [0, 128], sizes = [8, 64], strides = [1, 1]} : vector<8x192xf32> to vector<8x64xf32>
    %393 = arith.mulf %391, %343 : vector<8x64xf32>
    %394 = arith.mulf %390, %389 : vector<8x64xf32>
    %395 = arith.addf %393, %394 : vector<8x64xf32>
    %396 = math.tanh %395 : vector<8x64xf32>
    %397 = arith.mulf %392, %396 : vector<8x64xf32>
    %398 = tpu.concatenate %397, %365 in 1 : vector<8x64xf32>, vector<8x64xf32> -> vector<8x128xf32>
    %cst_58 = arith.constant dense<0.000000e+00> : vector<8x256xf32>
    %399 = tpu.matmul %398, %4, %cst_58 {dimension_numbers = #tpu.dot_dimension_numbers<[1], [0], [0], [1], [0, 0, 1, 1], [], []>} : vector<8x128xf32>, vector<128x256xf32>, vector<8x256xf32> -> vector<8x256xf32>
    %400 = vector.broadcast %5 : vector<1x256xf32> to vector<8x256xf32>
    %401 = arith.addf %399, %400 : vector<8x256xf32>
    %402 = vector.extract_strided_slice %401 {offsets = [0, 0], sizes = [8, 192], strides = [1, 1]} : vector<8x256xf32> to vector<8x192xf32>
    %403 = arith.negf %402 : vector<8x192xf32>
    %404 = math.exp %403 : vector<8x192xf32>
    %cst_59 = arith.constant 1.000000e+00 : f32
    %405 = vector.broadcast %cst_59 : f32 to vector<8x192xf32>
    %406 = arith.addf %405, %404 : vector<8x192xf32>
    %407 = arith.divf %405, %406 : vector<8x192xf32>
    %408 = vector.extract_strided_slice %401 {offsets = [0, 192], sizes = [8, 64], strides = [1, 1]} : vector<8x256xf32> to vector<8x64xf32>
    %409 = math.tanh %408 : vector<8x64xf32>
    %410 = vector.extract_strided_slice %407 {offsets = [0, 0], sizes = [8, 64], strides = [1, 1]} : vector<8x192xf32> to vector<8x64xf32>
    %411 = vector.extract_strided_slice %407 {offsets = [0, 64], sizes = [8, 64], strides = [1, 1]} : vector<8x192xf32> to vector<8x64xf32>
    %412 = vector.extract_strided_slice %407 {offsets = [0, 128], sizes = [8, 64], strides = [1, 1]} : vector<8x192xf32> to vector<8x64xf32>
    %413 = arith.mulf %411, %363 : vector<8x64xf32>
    %414 = arith.mulf %410, %409 : vector<8x64xf32>
    %415 = arith.addf %413, %414 : vector<8x64xf32>
    %416 = math.tanh %415 : vector<8x64xf32>
    %417 = arith.mulf %412, %416 : vector<8x64xf32>
    %cst_60 = arith.constant 0.000000e+00 : f32
    %418 = vector.broadcast %cst_60 : f32 to vector<8x64xf32>
    %419 = arith.minimumf %417, %418 : vector<8x64xf32>
    %420 = math.absf %417 : vector<8x64xf32>
    %cst_61 = arith.constant 0.000000e+00 : f32
    %421 = vector.broadcast %cst_61 : f32 to vector<8x64xf32>
    %422 = arith.subf %421, %420 : vector<8x64xf32>
    %423 = math.exp %422 : vector<8x64xf32>
    %424 = math.log1p %423 : vector<8x64xf32>
    %425 = arith.subf %419, %424 : vector<8x64xf32>
    %426 = tpu.concatenate %61, %113, %165, %217, %269, %321, %373, %425 in 1 : vector<8x64xf32>, vector<8x64xf32>, vector<8x64xf32>, vector<8x64xf32>, vector<8x64xf32>, vector<8x64xf32>, vector<8x64xf32>, vector<8x64xf32> -> vector<8x512xf32>
    %c0_62 = arith.constant 0 : index
    %c0_63 = arith.constant 0 : index
    %427 = vector.load %arg7[%c0_62, %c0_63] : memref<8x512xf32, #tpu.memory_space<vmem>>, vector<8x512xf32>
    tpu.vector_store %arg7[%c0_62, %c0_63], %426 {strides = array<i32>} : memref<8x512xf32, #tpu.memory_space<vmem>>, vector<8x512xf32>,
    return
  }
  func.func @transform_0(%arg0: i32) -> (i32, i32) {
    %c0_i32 = arith.constant 0 : i32
    %c0_i32_0 = arith.constant 0 : i32
    %c0_i32_1 = arith.constant 0 : i32
    return %c0_i32, %c0_i32_0 : i32, i32
  }
  func.func @transform_1(%arg0: i32) -> (i32, i32) {
    %c0_i32 = arith.constant 0 : i32
    %c0_i32_0 = arith.constant 0 : i32
    %c0_i32_1 = arith.constant 0 : i32
    return %c0_i32, %c0_i32_0 : i32, i32
  }
  func.func @transform_2(%arg0: i32) -> (i32, i32) {
    %c0_i32 = arith.constant 0 : i32
    %c0_i32_0 = arith.constant 0 : i32
    %c0_i32_1 = arith.constant 0 : i32
    return %c0_i32, %c0_i32_0 : i32, i32
  }
  func.func @transform_3(%arg0: i32) -> (i32, i32) {
    %c0_i32 = arith.constant 0 : i32
    %c0_i32_0 = arith.constant 0 : i32
    %c0_i32_1 = arith.constant 0 : i32
    return %c0_i32, %c0_i32_0 : i32, i32
  }
  func.func @transform_4(%arg0: i32) -> (i32, i32) {
    %c0_i32 = arith.constant 0 : i32
    %c0_i32_0 = arith.constant 0 : i32
    %c0_i32_1 = arith.constant 0 : i32
    return %c0_i32, %c0_i32_0 : i32, i32
  }
  func.func @transform_5(%arg0: i32) -> (i32, i32) {
    %c0_i32 = arith.constant 0 : i32
    %c0_i32_0 = arith.constant 0 : i32
    %c0_i32_1 = arith.constant 0 : i32
    return %c0_i32, %c0_i32_0 : i32, i32
  }
  func.func @transform_6(%arg0: i32) -> (i32, i32) {
    %c0_i32 = arith.constant 0 : i32
    %c0_i32_0 = arith.constant 0 : i32
    %c0_i32_1 = arith.constant 0 : i32
    return %c0_i32, %c0_i32_0 : i32, i32
  }
}

</mosaic_0001>

<llo_original>
// kernel: tpu_custom_call.1
$region0: #{tpu_custom_call.1}
  #allocation0 [shape = 'u32[]', space=smem, size = 0x4, offset = 0x4, fixed_abs, tag = 'smem constant byte address 0x4 - core index']
  #allocation1 [shape = 'u32[144,128]{1,0:T(1,128)}', space=vmem, size = 0x12000, scoped, tag = 'internal scratch']
  %s0 = inlined_call_operand.hbm [shape: f32[8,8], index: 0, kind: input, shape index: {}]
  %s1 = inlined_call_operand.vmem [shape: f32[1,256], index: 1, kind: input, shape index: {}]
  %s2 = inlined_call_operand.hbm [shape: f32[64,256], index: 2, kind: input, shape index: {}]
  %s3 = inlined_call_operand.vmem [shape: f32[1,256], index: 3, kind: input, shape index: {}]
  %s4 = inlined_call_operand.hbm [shape: f32[128,256], index: 4, kind: input, shape index: {}]
  %s5 = inlined_call_operand.vmem [shape: f32[1,256], index: 5, kind: input, shape index: {}]
  %s6 = inlined_call_operand.hbm [shape: f32[8,512], index: 6, kind: output, shape index: {}]
  %s7 = sld [smem:[#allocation0]]
  $region46: #{tpu_custom_call.1} parent=0
    _
  %s9 = ssub.s32 1, %s7
  %s10 = scalar_select 0, %s9, %s7
  $region1: #{tpu_custom_call.1} parent=0
    #allocation2 [shape = 'u8[4096]{0}', space=vmem, size = 0x1000, scoped, tag = 'input window, operand 0, single buffered']
    #allocation3 [shape = 's32[1]{0}', space=sflag, size = 0x4, scoped, tag = 'scoped memory for tpu_custom_call.1']
    #allocation4 [shape = 's32[1]{0}', space=sflag, size = 0x4, scoped, tag = 'scoped memory for tpu_custom_call.1']
    #allocation5 [shape = 'u8[65536]{0}', space=vmem, size = 0x10000, scoped, tag = 'input window, operand 2, single buffered']
    #allocation6 [shape = 's32[1]{0}', space=sflag, size = 0x4, scoped, tag = 'scoped memory for tpu_custom_call.1']
    #allocation7 [shape = 'u8[131072]{0}', space=vmem, size = 0x20000, scoped, tag = 'input window, operand 4, single buffered']
    #allocation8 [shape = 'u8[16384]{0}', space=vmem, size = 0x4000, scoped, tag = 'output window, operand 0, single buffered']
    %11 = vsyncpa [#allocation3], 0
    %12 = vsyncpa [#allocation6], 0
    %13 = vsyncpa [#allocation4], 0
    // Predicated region
    $region2: #{tpu_custom_call.1} parent=1 // pred_check
      _
    $region3: #{tpu_custom_call.1} parent=1 // pred_check_branch
      %15 = sbr.rel (0) target = $region5
    $region4: #{tpu_custom_call.1} parent=1 // pred_region
      %s17 = ssub.s32 128, 128
      %18 = vsyncadd [#allocation3], %s17
      %s20 = sshll.u32 [#allocation2], 4
      %s21 = int_to_ptr.vmem [resolvable:$true] %s20
      %23 = dma.hbm_to_vmem [thread:$0]  %s0, 128, %s21, [#allocation3]
    $region5: #{tpu_custom_call.1} parent=1 // pred_fallthru
      _
    // Predicated region
    $region6: #{tpu_custom_call.1} parent=1 // pred_check
      _
    $region7: #{tpu_custom_call.1} parent=1 // pred_check_branch
      %25 = sbr.rel (0) target = $region9
    $region8: #{tpu_custom_call.1} parent=1 // pred_region
      _
    $region9: #{tpu_custom_call.1} parent=1 // pred_fallthru
      _
    // Predicated region
    $region10: #{tpu_custom_call.1} parent=1 // pred_check
      _
    $region11: #{tpu_custom_call.1} parent=1 // pred_check_branch
      %27 = sbr.rel (0) target = $region13
    $region12: #{tpu_custom_call.1} parent=1 // pred_region
      %s29 = ssub.s32 2048, 2048
      %30 = vsyncadd [#allocation6], %s29
      %s31 = sshll.u32 [#allocation5], 4
      %s32 = int_to_ptr.vmem [resolvable:$true] %s31
      %37 = dma.hbm_to_vmem [thread:$0]  %s2, 2048, %s32, [#allocation6], 256, 256, 16
    $region13: #{tpu_custom_call.1} parent=1 // pred_fallthru
      _
    // Predicated region
    $region14: #{tpu_custom_call.1} parent=1 // pred_check
      _
    $region15: #{tpu_custom_call.1} parent=1 // pred_check_branch
      %39 = sbr.rel (0) target = $region17
    $region16: #{tpu_custom_call.1} parent=1 // pred_region
      _
    $region17: #{tpu_custom_call.1} parent=1 // pred_fallthru
      _
    // Predicated region
    $region18: #{tpu_custom_call.1} parent=1 // pred_check
      _
    $region19: #{tpu_custom_call.1} parent=1 // pred_check_branch
      %41 = sbr.rel (0) target = $region21
    $region20: #{tpu_custom_call.1} parent=1 // pred_region
      %s43 = ssub.s32 4096, 4096
      %44 = vsyncadd [#allocation6], %s43
      %s45 = sshll.u32 [#allocation7], 4
      %s46 = int_to_ptr.vmem [resolvable:$true] %s45
      %51 = dma.hbm_to_vmem [thread:$0]  %s4, 4096, %s46, [#allocation6], 256, 256, 16
    $region21: #{tpu_custom_call.1} parent=1 // pred_fallthru
      _
    // Predicated region
    $region22: #{tpu_custom_call.1} parent=1 // pred_check
      _
    $region23: #{tpu_custom_call.1} parent=1 // pred_check_branch
      %53 = sbr.rel (0) target = $region25
    $region24: #{tpu_custom_call.1} parent=1 // pred_region
      _
    $region25: #{tpu_custom_call.1} parent=1 // pred_fallthru
      _
    // Predicated region
    $region26: #{tpu_custom_call.1} parent=1 // pred_check
      _
    $region27: #{tpu_custom_call.1} parent=1 // pred_check_branch
      %55 = sbr.rel (0) target = $region29
    $region28: #{tpu_custom_call.1} parent=1 // pred_region
      %56 = dma.done [#allocation3], 128
    $region29: #{tpu_custom_call.1} parent=1 // pred_fallthru
      _
    // Predicated region
    $region30: #{tpu_custom_call.1} parent=1 // pred_check
      _
    $region31: #{tpu_custom_call.1} parent=1 // pred_check_branch
      %58 = sbr.rel (0) target = $region33
    $region32: #{tpu_custom_call.1} parent=1 // pred_region
      %59 = dma.done [#allocation6], 2048
    $region33: #{tpu_custom_call.1} parent=1 // pred_fallthru
      _
    // Predicated region
    $region34: #{tpu_custom_call.1} parent=1 // pred_check
      _
    $region35: #{tpu_custom_call.1} parent=1 // pred_check_branch
      %61 = sbr.rel (0) target = $region37
    $region36: #{tpu_custom_call.1} parent=1 // pred_region
      %62 = dma.done [#allocation6], 4096
    $region37: #{tpu_custom_call.1} parent=1 // pred_fallthru
      _
    %v63 = vld [vmem:[#allocation2] sm:$0xff]
    %v64 = vld [vmem:[%s1] sm:$0x3]
    %v65 = vld [vmem:[#allocation5] sm:$0xff]
    %v66 = vld [vmem:[#allocation5 + $0x8] sm:$0xff]
    %v67 = vld [vmem:[#allocation5 + $0x10] sm:$0xff]
    %v68 = vld [vmem:[#allocation5 + $0x18] sm:$0xff]
    %v69 = vld [vmem:[#allocation5 + $0x20] sm:$0xff]
    %v70 = vld [vmem:[#allocation5 + $0x28] sm:$0xff]
    %v71 = vld [vmem:[#allocation5 + $0x30] sm:$0xff]
    %v72 = vld [vmem:[#allocation5 + $0x38] sm:$0xff]
    %v73 = vld [vmem:[#allocation5 + $0x40] sm:$0xff]
    %v74 = vld [vmem:[#allocation5 + $0x48] sm:$0xff]
    %v75 = vld [vmem:[#allocation5 + $0x50] sm:$0xff]
    %v76 = vld [vmem:[#allocation5 + $0x58] sm:$0xff]
    %v77 = vld [vmem:[#allocation5 + $0x60] sm:$0xff]
    %v78 = vld [vmem:[#allocation5 + $0x68] sm:$0xff]
    %v79 = vld [vmem:[#allocation5 + $0x70] sm:$0xff]
    %v80 = vld [vmem:[#allocation5 + $0x78] sm:$0xff]
    %v81 = vld [vmem:[%s3] sm:$0x3]
    %v82 = vld [vmem:[#allocation7] sm:$0xff]
    %v83 = vld [vmem:[#allocation7 + $0x8] sm:$0xff]
    %v84 = vld [vmem:[#allocation7 + $0x10] sm:$0xff]
    %v85 = vld [vmem:[#allocation7 + $0x18] sm:$0xff]
    %v86 = vld [vmem:[#allocation7 + $0x20] sm:$0xff]
    %v87 = vld [vmem:[#allocation7 + $0x28] sm:$0xff]
    %v88 = vld [vmem:[#allocation7 + $0x30] sm:$0xff]
    %v89 = vld [vmem:[#allocation7 + $0x38] sm:$0xff]
    %v90 = vld [vmem:[#allocation7 + $0x40] sm:$0xff]
    %v91 = vld [vmem:[#allocation7 + $0x48] sm:$0xff]
    %v92 = vld [vmem:[#allocation7 + $0x50] sm:$0xff]
    %v93 = vld [vmem:[#allocation7 + $0x58] sm:$0xff]
    %v94 = vld [vmem:[#allocation7 + $0x60] sm:$0xff]
    %v95 = vld [vmem:[#allocation7 + $0x68] sm:$0xff]
    %v96 = vld [vmem:[#allocation7 + $0x70] sm:$0xff]
    %v97 = vld [vmem:[#allocation7 + $0x78] sm:$0xff]
    %v98 = vld [vmem:[#allocation7 + $0x80] sm:$0xff]
    %v99 = vld [vmem:[#allocation7 + $0x88] sm:$0xff]
    %v100 = vld [vmem:[#allocation7 + $0x90] sm:$0xff]
    %v101 = vld [vmem:[#allocation7 + $0x98] sm:$0xff]
    %v102 = vld [vmem:[#allocation7 + $0xa0] sm:$0xff]
    %v103 = vld [vmem:[#allocation7 + $0xa8] sm:$0xff]
    %v104 = vld [vmem:[#allocation7 + $0xb0] sm:$0xff]
    %v105 = vld [vmem:[#allocation7 + $0xb8] sm:$0xff]
    %v106 = vld [vmem:[#allocation7 + $0xc0] sm:$0xff]
    %v107 = vld [vmem:[#allocation7 + $0xc8] sm:$0xff]
    %v108 = vld [vmem:[#allocation7 + $0xd0] sm:$0xff]
    %v109 = vld [vmem:[#allocation7 + $0xd8] sm:$0xff]
    %v110 = vld [vmem:[#allocation7 + $0xe0] sm:$0xff]
    %v111 = vld [vmem:[#allocation7 + $0xe8] sm:$0xff]
    %v112 = vld [vmem:[#allocation7 + $0xf0] sm:$0xff]
    %v113 = vld [vmem:[#allocation7 + $0xf8] sm:$0xff]
    %v114 = vld [vmem:[%s5] sm:$0x3]
    %116 = vset.pattern.permute.xlu0 0
    %117 = vperm.xlu0 %116, %v63
    %v118 = vpop.permute.xlu0 %117
    %v121 = vlaneseq
    %v122 = vshrl.u32 %v121, 7
    %v123 = vsub.s32 0, %v122
    %v124 = vrot.slane %v64, %v123
    %v125 = vlaneseq
    %v126 = vshrl.u32 %v125, 7
    %v127 = vsub.s32 1, %v126
    %v128 = vrot.slane %v64, %v127
    %v131 = vmul.f32 %v118, %v124
    %v132 = vmul.f32 %v118, %v128
    %vm133 = vcmask 523264
    %v135 = vsel %vm133, 0.0, 0
    %137 = vmatprep.subr.mxu0 %v66
    %138 = vmatpush1.msra.mxu0 %v65
    %139 = vmatprep.subr.mxu0 %v68
    %140 = vmatpush1.msra.mxu0 %v67
    %141 = vmatprep.subr.mxu0 %v70
    %142 = vmatpush1.msra.mxu0 %v69
    %143 = vmatprep.subr.mxu0 %v72
    %144 = vmatpush1.msra.mxu0 %v71
    %145 = vmatprep.subr.mxu0 %v74
    %146 = vmatpush1.msra.mxu0 %v73
    %147 = vmatprep.subr.mxu0 %v76
    %148 = vmatpush1.msra.mxu0 %v75
    %149 = vmatprep.subr.mxu0 %v78
    %150 = vmatpush1.msra.mxu0 %v77
    %151 = vmatprep.subr.mxu0 %v80
    %152 = vmatpush1.msra.mxu0 %v79
    %153 = vmatprep.subr.mxu0 0.0
    %154 = vmatpush1.msra.mxu0 0.0
    %155 = vmatprep.subr.mxu0 0.0
    %156 = vmatpush1.msra.mxu0 0.0
    %157 = vmatprep.subr.mxu0 0.0
    %158 = vmatpush1.msra.mxu0 0.0
    %159 = vmatprep.subr.mxu0 0.0
    %160 = vmatpush1.msra.mxu0 0.0
    %161 = vmatprep.subr.mxu0 0.0
    %162 = vmatpush1.msra.mxu0 0.0
    %163 = vmatprep.subr.mxu0 0.0
    %164 = vmatpush1.msra.mxu0 0.0
    %165 = vmatprep.subr.mxu0 0.0
    %166 = vmatpush1.msra.mxu0 0.0
    %167 = vmatprep.subr.mxu0 0.0
    %168 = vmatpush1.msra.mxu0 0.0
    %169 = vmatprep.subr.mxu0 0.0
    %170 = vmatpush1.msra.mxu0 0.0
    %171 = vmatprep.subr.mxu0 0.0
    %172 = vmatpush1.msra.mxu0 0.0
    %173 = vmatprep.subr.mxu0 0.0
    %174 = vmatpush1.msra.mxu0 0.0
    %175 = vmatprep.subr.mxu0 0.0
    %176 = vmatpush1.msra.mxu0 0.0
    %177 = vmatprep.subr.mxu0 0.0
    %178 = vmatpush1.msra.mxu0 0.0
    %179 = vmatprep.subr.mxu0 0.0
    %180 = vmatpush1.msra.mxu0 0.0
    %181 = vmatprep.subr.mxu0 0.0
    %182 = vmatpush1.msra.mxu0 0.0
    %183 = vmatprep.subr.mxu0 0.0
    %184 = vmatpush1.msra.mxu0 0.0
    %185 = vmatprep.subr.mxu0 0.0
    %186 = vmatpush1.msra.mxu0 0.0
    %187 = vmatprep.subr.mxu0 0.0
    %188 = vmatpush1.msra.mxu0 0.0
    %189 = vmatprep.subr.mxu0 0.0
    %190 = vmatpush1.msra.mxu0 0.0
    %191 = vmatprep.subr.mxu0 0.0
    %192 = vmatpush1.msra.mxu0 0.0
    %193 = vmatprep.subr.mxu0 0.0
    %194 = vmatpush1.msra.mxu0 0.0
    %195 = vmatprep.subr.mxu0 0.0
    %196 = vmatpush1.msra.mxu0 0.0
    %197 = vmatprep.subr.mxu0 0.0
    %198 = vmatpush1.msra.mxu0 0.0
    %199 = vmatprep.subr.mxu0 0.0
    %200 = vmatpush1.msra.mxu0 0.0
    %201 = vmatprep.mubr.f32.mxu0 0.0
    %202 = vmatmul.mubr.f32.gmra.mrb[0].mxu0 %v135
    %v203 = vpop.f32.mrb[0].mxu0
    %v204 = vadd.f32 0.0, %v203
    %v205 = vpop.f32.mrb[0].mxu0
    %v206 = vadd.f32 0.0, %v205
    %207 = vdwg.mxu0
    %v208 = vadd.f32 %v131, %v204
    %v209 = vadd.f32 %v132, %v206
    %v211 = vlaneseq
    %v212 = vshrl.u32 %v211, 7
    %v213 = vsub.s32 0, %v212
    %v214 = vrot.slane %v81, %v213
    %v215 = vlaneseq
    %v216 = vshrl.u32 %v215, 7
    %v217 = vsub.s32 1, %v216
    %v218 = vrot.slane %v81, %v217
    %v221 = vadd.f32 %v208, %v214
    %v222 = vadd.f32 %v209, %v218
    %v223 = vxor.u32 %v221, 2147483648
    %v224 = vxor.u32 %v222, 2147483648
    %v225 = vmul.f32 %v223, 1.442695
    %v226 = vpow.pop %v225
    %v227 = vmul.f32 %v224, 1.442695
    %v228 = vpow.pop %v227
    %v229 = vadd.f32 %v226, 1.0
    %v230 = vadd.f32 %v228, 1.0
    %v231 = vrcp.pop %v229
    %v232 = vmul.f32 1.0, %v231
    %v233 = vrcp.pop %v230
    %v234 = vmul.f32 1.0, %v233
    %v235 = vtanh.pop %v222
    %v236 = vmul.f32 %v232, 0.0
    %238 = vrot.lane.b32.xlu0 %v235, 64
    %v239 = vpop.permute.xlu0 %238
    %v241 = vmul.f32 %v232, %v239
    %243 = vrot.lane.b32.xlu0 %v241, 64
    %v244 = vpop.permute.xlu0 %243
    %v246 = vadd.f32 %v236, %v244
    %v247 = vtanh.pop %v246
    %249 = vrot.lane.b32.xlu0 %v247, 64
    %v250 = vpop.permute.xlu0 %249
    %v252 = vmul.f32 %v234, %v250
    %v253 = vsel %vm133, %v252, 0.0
    %v255 = vlaneseq
    %v256 = vshrl.u32 %v255, 7
    %v257 = vsub.s32 0, %v256
    %v258 = vrot.slane %v114, %v257
    %v259 = vlaneseq
    %v260 = vshrl.u32 %v259, 7
    %v261 = vsub.s32 1, %v260
    %v262 = vrot.slane %v114, %v261
    %265 = vmatprep.subr.mxu0 %v83
    %266 = vmatpush1.msra.mxu0 %v82
    %267 = vmatprep.subr.mxu0 %v85
    %268 = vmatpush1.msra.mxu0 %v84
    %269 = vmatprep.subr.mxu0 %v87
    %270 = vmatpush1.msra.mxu0 %v86
    %271 = vmatprep.subr.mxu0 %v89
    %272 = vmatpush1.msra.mxu0 %v88
    %273 = vmatprep.subr.mxu0 %v91
    %274 = vmatpush1.msra.mxu0 %v90
    %275 = vmatprep.subr.mxu0 %v93
    %276 = vmatpush1.msra.mxu0 %v92
    %277 = vmatprep.subr.mxu0 %v95
    %278 = vmatpush1.msra.mxu0 %v94
    %279 = vmatprep.subr.mxu0 %v97
    %280 = vmatpush1.msra.mxu0 %v96
    %281 = vmatprep.subr.mxu0 %v99
    %282 = vmatpush1.msra.mxu0 %v98
    %283 = vmatprep.subr.mxu0 %v101
    %284 = vmatpush1.msra.mxu0 %v100
    %285 = vmatprep.subr.mxu0 %v103
    %286 = vmatpush1.msra.mxu0 %v102
    %287 = vmatprep.subr.mxu0 %v105
    %288 = vmatpush1.msra.mxu0 %v104
    %289 = vmatprep.subr.mxu0 %v107
    %290 = vmatpush1.msra.mxu0 %v106
    %291 = vmatprep.subr.mxu0 %v109
    %292 = vmatpush1.msra.mxu0 %v108
    %293 = vmatprep.subr.mxu0 %v111
    %294 = vmatpush1.msra.mxu0 %v110
    %295 = vmatprep.subr.mxu0 %v113
    %296 = vmatpush1.msra.mxu0 %v112
    %297 = vmatprep.subr.mxu0 0.0
    %298 = vmatpush1.msra.mxu0 0.0
    %299 = vmatprep.subr.mxu0 0.0
    %300 = vmatpush1.msra.mxu0 0.0
    %301 = vmatprep.subr.mxu0 0.0
    %302 = vmatpush1.msra.mxu0 0.0
    %303 = vmatprep.subr.mxu0 0.0
    %304 = vmatpush1.msra.mxu0 0.0
    %305 = vmatprep.subr.mxu0 0.0
    %306 = vmatpush1.msra.mxu0 0.0
    %307 = vmatprep.subr.mxu0 0.0
    %308 = vmatpush1.msra.mxu0 0.0
    %309 = vmatprep.subr.mxu0 0.0
    %310 = vmatpush1.msra.mxu0 0.0
    %311 = vmatprep.subr.mxu0 0.0
    %312 = vmatpush1.msra.mxu0 0.0
    %313 = vmatprep.subr.mxu0 0.0
    %314 = vmatpush1.msra.mxu0 0.0
    %315 = vmatprep.subr.mxu0 0.0
    %316 = vmatpush1.msra.mxu0 0.0
    %317 = vmatprep.subr.mxu0 0.0
    %318 = vmatpush1.msra.mxu0 0.0
    %319 = vmatprep.subr.mxu0 0.0
    %320 = vmatpush1.msra.mxu0 0.0
    %321 = vmatprep.subr.mxu0 0.0
    %322 = vmatpush1.msra.mxu0 0.0
    %323 = vmatprep.subr.mxu0 0.0
    %324 = vmatpush1.msra.mxu0 0.0
    %325 = vmatprep.subr.mxu0 0.0
    %326 = vmatpush1.msra.mxu0 0.0
    %327 = vmatprep.subr.mxu0 0.0
    %328 = vmatpush1.msra.mxu0 0.0
    %329 = vmatprep.mubr.f32.mxu0 0.0
    %330 = vmatmul.mubr.f32.gmra.mrb[0].mxu0 %v253
    %v331 = vpop.f32.mrb[0].mxu0
    %v332 = vadd.f32 %v258, %v331
    %v333 = vpop.f32.mrb[0].mxu0
    %v334 = vadd.f32 %v262, %v333
    %335 = vdwg.mxu0
    %v336 = vxor.u32 %v332, 2147483648
    %v337 = vxor.u32 %v334, 2147483648
    %v338 = vmul.f32 %v336, 1.442695
    %v339 = vpow.pop %v338
    %v340 = vmul.f32 %v337, 1.442695
    %v341 = vpow.pop %v340
    %v342 = vadd.f32 %v339, 1.0
    %v343 = vadd.f32 %v341, 1.0
    %v344 = vrcp.pop %v342
    %v345 = vmul.f32 1.0, %v344
    %v346 = vrcp.pop %v343
    %v347 = vmul.f32 1.0, %v346
    %v348 = vtanh.pop %v334
    %v349 = vmul.f32 %v345, 0.0
    %351 = vrot.lane.b32.xlu0 %v348, 64
    %v352 = vpop.permute.xlu0 %351
    %v354 = vmul.f32 %v345, %v352
    %356 = vrot.lane.b32.xlu0 %v354, 64
    %v357 = vpop.permute.xlu0 %356
    %v359 = vadd.f32 %v349, %v357
    %v360 = vtanh.pop %v359
    %362 = vrot.lane.b32.xlu0 %v360, 64
    %v363 = vpop.permute.xlu0 %362
    %v365 = vmul.f32 %v347, %v363
    %v366 = vmin.f32 %v365, 0.0
    %v367 = vand.u32 2147483647, %v365
    %v368 = vsub.f32 0.0, %v367
    %v369 = vmul.f32 %v368, 1.442695
    %v370 = vpow.pop %v369
    %v371 = vadd.f32 %v370, 1.0
    %v372 = vlog2.pop %v371
    %v373 = vmul.f32 %v372, 0.6931472
    %v374 = vmul.f32 -0.5, %v370
    %v375 = vadd.f32 %v374, 1.0
    %v376 = vmul.f32 %v375, %v370
    %v377 = vand.u32 2147483647, %v370
    %vm378 = vcmp.lt.f32.partialorder %v377, 0.0004427343
    %v379 = vsel %vm378, %v376, %v373
    %v380 = vsub.f32 %v366, %v379
    %381 = vset.pattern.permute.xlu0 1
    %382 = vperm.xlu0 %381, %v63
    %v383 = vpop.permute.xlu0 %382
    %v385 = vmul.f32 %v383, %v124
    %v386 = vmul.f32 %v383, %v128
    %v388 = vsel %vm133, %v252, 0
    %390 = vmatprep.subr.mxu0 %v66
    %391 = vmatpush1.msra.mxu0 %v65
    %392 = vmatprep.subr.mxu0 %v68
    %393 = vmatpush1.msra.mxu0 %v67
    %394 = vmatprep.subr.mxu0 %v70
    %395 = vmatpush1.msra.mxu0 %v69
    %396 = vmatprep.subr.mxu0 %v72
    %397 = vmatpush1.msra.mxu0 %v71
    %398 = vmatprep.subr.mxu0 %v74
    %399 = vmatpush1.msra.mxu0 %v73
    %400 = vmatprep.subr.mxu0 %v76
    %401 = vmatpush1.msra.mxu0 %v75
    %402 = vmatprep.subr.mxu0 %v78
    %403 = vmatpush1.msra.mxu0 %v77
    %404 = vmatprep.subr.mxu0 %v80
    %405 = vmatpush1.msra.mxu0 %v79
    %406 = vmatprep.subr.mxu0 0.0
    %407 = vmatpush1.msra.mxu0 0.0
    %408 = vmatprep.subr.mxu0 0.0
    %409 = vmatpush1.msra.mxu0 0.0
    %410 = vmatprep.subr.mxu0 0.0
    %411 = vmatpush1.msra.mxu0 0.0
    %412 = vmatprep.subr.mxu0 0.0
    %413 = vmatpush1.msra.mxu0 0.0
    %414 = vmatprep.subr.mxu0 0.0
    %415 = vmatpush1.msra.mxu0 0.0
    %416 = vmatprep.subr.mxu0 0.0
    %417 = vmatpush1.msra.mxu0 0.0
    %418 = vmatprep.subr.mxu0 0.0
    %419 = vmatpush1.msra.mxu0 0.0
    %420 = vmatprep.subr.mxu0 0.0
    %421 = vmatpush1.msra.mxu0 0.0
    %422 = vmatprep.subr.mxu0 0.0
    %423 = vmatpush1.msra.mxu0 0.0
    %424 = vmatprep.subr.mxu0 0.0
    %425 = vmatpush1.msra.mxu0 0.0
    %426 = vmatprep.subr.mxu0 0.0
    %427 = vmatpush1.msra.mxu0 0.0
    %428 = vmatprep.subr.mxu0 0.0
    %429 = vmatpush1.msra.mxu0 0.0
    %430 = vmatprep.subr.mxu0 0.0
    %431 = vmatpush1.msra.mxu0 0.0
    %432 = vmatprep.subr.mxu0 0.0
    %433 = vmatpush1.msra.mxu0 0.0
    %434 = vmatprep.subr.mxu0 0.0
    %435 = vmatpush1.msra.mxu0 0.0
    %436 = vmatprep.subr.mxu0 0.0
    %437 = vmatpush1.msra.mxu0 0.0
    %438 = vmatprep.subr.mxu0 0.0
    %439 = vmatpush1.msra.mxu0 0.0
    %440 = vmatprep.subr.mxu0 0.0
    %441 = vmatpush1.msra.mxu0 0.0
    %442 = vmatprep.subr.mxu0 0.0
    %443 = vmatpush1.msra.mxu0 0.0
    %444 = vmatprep.subr.mxu0 0.0
    %445 = vmatpush1.msra.mxu0 0.0
    %446 = vmatprep.subr.mxu0 0.0
    %447 = vmatpush1.msra.mxu0 0.0
    %448 = vmatprep.subr.mxu0 0.0
    %449 = vmatpush1.msra.mxu0 0.0
    %450 = vmatprep.subr.mxu0 0.0
    %451 = vmatpush1.msra.mxu0 0.0
    %452 = vmatprep.subr.mxu0 0.0
    %453 = vmatpush1.msra.mxu0 0.0
    %454 = vmatprep.mubr.f32.mxu0 0.0
    %455 = vmatmul.mubr.f32.gmra.mrb[0].mxu0 %v388
    %v456 = vpop.f32.mrb[0].mxu0
    %v457 = vadd.f32 0.0, %v456
    %v458 = vpop.f32.mrb[0].mxu0
    %v459 = vadd.f32 0.0, %v458
    %460 = vdwg.mxu0
    %v461 = vadd.f32 %v385, %v457
    %v462 = vadd.f32 %v386, %v459
    %v463 = vadd.f32 %v461, %v214
    %v464 = vadd.f32 %v462, %v218
    %v465 = vxor.u32 %v463, 2147483648
    %v466 = vxor.u32 %v464, 2147483648
    %v467 = vmul.f32 %v465, 1.442695
    %v468 = vpow.pop %v467
    %v469 = vmul.f32 %v466, 1.442695
    %v470 = vpow.pop %v469
    %v471 = vadd.f32 %v468, 1.0
    %v472 = vadd.f32 %v470, 1.0
    %v473 = vrcp.pop %v471
    %v474 = vmul.f32 1.0, %v473
    %v475 = vrcp.pop %v472
    %v476 = vmul.f32 1.0, %v475
    %v477 = vtanh.pop %v464
    %v478 = vmul.f32 %v474, %v246
    %480 = vrot.lane.b32.xlu0 %v477, 64
    %v481 = vpop.permute.xlu0 %480
    %v483 = vmul.f32 %v474, %v481
    %485 = vrot.lane.b32.xlu0 %v483, 64
    %v486 = vpop.permute.xlu0 %485
    %v488 = vadd.f32 %v478, %v486
    %v489 = vtanh.pop %v488
    %491 = vrot.lane.b32.xlu0 %v489, 64
    %v492 = vpop.permute.xlu0 %491
    %v494 = vmul.f32 %v476, %v492
    %496 = vrot.lane.b32.xlu0 %v365, 64
    %v497 = vpop.permute.xlu0 %496
    %v499 = vsel %vm133, %v494, %v497
    %500 = vmatprep.subr.mxu0 %v83
    %501 = vmatpush1.msra.mxu0 %v82
    %502 = vmatprep.subr.mxu0 %v85
    %503 = vmatpush1.msra.mxu0 %v84
    %504 = vmatprep.subr.mxu0 %v87
    %505 = vmatpush1.msra.mxu0 %v86
    %506 = vmatprep.subr.mxu0 %v89
    %507 = vmatpush1.msra.mxu0 %v88
    %508 = vmatprep.subr.mxu0 %v91
    %509 = vmatpush1.msra.mxu0 %v90
    %510 = vmatprep.subr.mxu0 %v93
    %511 = vmatpush1.msra.mxu0 %v92
    %512 = vmatprep.subr.mxu0 %v95
    %513 = vmatpush1.msra.mxu0 %v94
    %514 = vmatprep.subr.mxu0 %v97
    %515 = vmatpush1.msra.mxu0 %v96
    %516 = vmatprep.subr.mxu0 %v99
    %517 = vmatpush1.msra.mxu0 %v98
    %518 = vmatprep.subr.mxu0 %v101
    %519 = vmatpush1.msra.mxu0 %v100
    %520 = vmatprep.subr.mxu0 %v103
    %521 = vmatpush1.msra.mxu0 %v102
    %522 = vmatprep.subr.mxu0 %v105
    %523 = vmatpush1.msra.mxu0 %v104
    %524 = vmatprep.subr.mxu0 %v107
    %525 = vmatpush1.msra.mxu0 %v106
    %526 = vmatprep.subr.mxu0 %v109
    %527 = vmatpush1.msra.mxu0 %v108
    %528 = vmatprep.subr.mxu0 %v111
    %529 = vmatpush1.msra.mxu0 %v110
    %530 = vmatprep.subr.mxu0 %v113
    %531 = vmatpush1.msra.mxu0 %v112
    %532 = vmatprep.subr.mxu0 0.0
    %533 = vmatpush1.msra.mxu0 0.0
    %534 = vmatprep.subr.mxu0 0.0
    %535 = vmatpush1.msra.mxu0 0.0
    %536 = vmatprep.subr.mxu0 0.0
    %537 = vmatpush1.msra.mxu0 0.0
    %538 = vmatprep.subr.mxu0 0.0
    %539 = vmatpush1.msra.mxu0 0.0
    %540 = vmatprep.subr.mxu0 0.0
    %541 = vmatpush1.msra.mxu0 0.0
    %542 = vmatprep.subr.mxu0 0.0
    %543 = vmatpush1.msra.mxu0 0.0
    %544 = vmatprep.subr.mxu0 0.0
    %545 = vmatpush1.msra.mxu0 0.0
    %546 = vmatprep.subr.mxu0 0.0
    %547 = vmatpush1.msra.mxu0 0.0
    %548 = vmatprep.subr.mxu0 0.0
    %549 = vmatpush1.msra.mxu0 0.0
    %550 = vmatprep.subr.mxu0 0.0
    %551 = vmatpush1.msra.mxu0 0.0
    %552 = vmatprep.subr.mxu0 0.0
    %553 = vmatpush1.msra.mxu0 0.0
    %554 = vmatprep.subr.mxu0 0.0
    %555 = vmatpush1.msra.mxu0 0.0
    %556 = vmatprep.subr.mxu0 0.0
    %557 = vmatpush1.msra.mxu0 0.0
    %558 = vmatprep.subr.mxu0 0.0
    %559 = vmatpush1.msra.mxu0 0.0
    %560 = vmatprep.subr.mxu0 0.0
    %561 = vmatpush1.msra.mxu0 0.0
    %562 = vmatprep.subr.mxu0 0.0
    %563 = vmatpush1.msra.mxu0 0.0
    %564 = vmatprep.mubr.f32.mxu0 0.0
    %565 = vmatmul.mubr.f32.gmra.mrb[0].mxu0 %v499
    %v566 = vpop.f32.mrb[0].mxu0
    %v567 = vadd.f32 %v258, %v566
    %v568 = vpop.f32.mrb[0].mxu0
    %v569 = vadd.f32 %v262, %v568
    %570 = vdwg.mxu0
    %v571 = vxor.u32 %v567, 2147483648
    %v572 = vxor.u32 %v569, 2147483648
    %v573 = vmul.f32 %v571, 1.442695
    %v574 = vpow.pop %v573
    %v575 = vmul.f32 %v572, 1.442695
    %v576 = vpow.pop %v575
    %v577 = vadd.f32 %v574, 1.0
    %v578 = vadd.f32 %v576, 1.0
    %v579 = vrcp.pop %v577
    %v580 = vmul.f32 1.0, %v579
    %v581 = vrcp.pop %v578
    %v582 = vmul.f32 1.0, %v581
    %v583 = vtanh.pop %v569
    %v584 = vmul.f32 %v580, %v359
    %586 = vrot.lane.b32.xlu0 %v583, 64
    %v587 = vpop.permute.xlu0 %586
    %v589 = vmul.f32 %v580, %v587
    %591 = vrot.lane.b32.xlu0 %v589, 64
    %v592 = vpop.permute.xlu0 %591
    %v594 = vadd.f32 %v584, %v592
    %v595 = vtanh.pop %v594
    %597 = vrot.lane.b32.xlu0 %v595, 64
    %v598 = vpop.permute.xlu0 %597
    %v600 = vmul.f32 %v582, %v598
    %v601 = vmin.f32 %v600, 0.0
    %v602 = vand.u32 2147483647, %v600
    %v603 = vsub.f32 0.0, %v602
    %v604 = vmul.f32 %v603, 1.442695
    %v605 = vpow.pop %v604
    %v606 = vadd.f32 %v605, 1.0
    %v607 = vlog2.pop %v606
    %v608 = vmul.f32 %v607, 0.6931472
    %v609 = vmul.f32 -0.5, %v605
    %v610 = vadd.f32 %v609, 1.0
    %v611 = vmul.f32 %v610, %v605
    %v612 = vand.u32 2147483647, %v605
    %vm613 = vcmp.lt.f32.partialorder %v612, 0.0004427343
    %v614 = vsel %vm613, %v611, %v608
    %v615 = vsub.f32 %v601, %v614
    %616 = vset.pattern.permute.xlu0 2
    %617 = vperm.xlu0 %616, %v63
    %v618 = vpop.permute.xlu0 %617
    %v620 = vmul.f32 %v618, %v124
    %v621 = vmul.f32 %v618, %v128
    %v623 = vsel %vm133, %v494, 0
    %625 = vmatprep.subr.mxu0 %v66
    %626 = vmatpush1.msra.mxu0 %v65
    %627 = vmatprep.subr.mxu0 %v68
    %628 = vmatpush1.msra.mxu0 %v67
    %629 = vmatprep.subr.mxu0 %v70
    %630 = vmatpush1.msra.mxu0 %v69
    %631 = vmatprep.subr.mxu0 %v72
    %632 = vmatpush1.msra.mxu0 %v71
    %633 = vmatprep.subr.mxu0 %v74
    %634 = vmatpush1.msra.mxu0 %v73
    %635 = vmatprep.subr.mxu0 %v76
    %636 = vmatpush1.msra.mxu0 %v75
    %637 = vmatprep.subr.mxu0 %v78
    %638 = vmatpush1.msra.mxu0 %v77
    %639 = vmatprep.subr.mxu0 %v80
    %640 = vmatpush1.msra.mxu0 %v79
    %641 = vmatprep.subr.mxu0 0.0
    %642 = vmatpush1.msra.mxu0 0.0
    %643 = vmatprep.subr.mxu0 0.0
    %644 = vmatpush1.msra.mxu0 0.0
    %645 = vmatprep.subr.mxu0 0.0
    %646 = vmatpush1.msra.mxu0 0.0
    %647 = vmatprep.subr.mxu0 0.0
    %648 = vmatpush1.msra.mxu0 0.0
    %649 = vmatprep.subr.mxu0 0.0
    %650 = vmatpush1.msra.mxu0 0.0
    %651 = vmatprep.subr.mxu0 0.0
    %652 = vmatpush1.msra.mxu0 0.0
    %653 = vmatprep.subr.mxu0 0.0
    %654 = vmatpush1.msra.mxu0 0.0
    %655 = vmatprep.subr.mxu0 0.0
    %656 = vmatpush1.msra.mxu0 0.0
    %657 = vmatprep.subr.mxu0 0.0
    %658 = vmatpush1.msra.mxu0 0.0
    %659 = vmatprep.subr.mxu0 0.0
    %660 = vmatpush1.msra.mxu0 0.0
    %661 = vmatprep.subr.mxu0 0.0
    %662 = vmatpush1.msra.mxu0 0.0
    %663 = vmatprep.subr.mxu0 0.0
    %664 = vmatpush1.msra.mxu0 0.0
    %665 = vmatprep.subr.mxu0 0.0
    %666 = vmatpush1.msra.mxu0 0.0
    %667 = vmatprep.subr.mxu0 0.0
    %668 = vmatpush1.msra.mxu0 0.0
    %669 = vmatprep.subr.mxu0 0.0
    %670 = vmatpush1.msra.mxu0 0.0
    %671 = vmatprep.subr.mxu0 0.0
    %672 = vmatpush1.msra.mxu0 0.0
    %673 = vmatprep.subr.mxu0 0.0
    %674 = vmatpush1.msra.mxu0 0.0
    %675 = vmatprep.subr.mxu0 0.0
    %676 = vmatpush1.msra.mxu0 0.0
    %677 = vmatprep.subr.mxu0 0.0
    %678 = vmatpush1.msra.mxu0 0.0
    %679 = vmatprep.subr.mxu0 0.0
    %680 = vmatpush1.msra.mxu0 0.0
    %681 = vmatprep.subr.mxu0 0.0
    %682 = vmatpush1.msra.mxu0 0.0
    %683 = vmatprep.subr.mxu0 0.0
    %684 = vmatpush1.msra.mxu0 0.0
    %685 = vmatprep.subr.mxu0 0.0
    %686 = vmatpush1.msra.mxu0 0.0
    %687 = vmatprep.subr.mxu0 0.0
    %688 = vmatpush1.msra.mxu0 0.0
    %689 = vmatprep.mubr.f32.mxu0 0.0
    %690 = vmatmul.mubr.f32.gmra.mrb[0].mxu0 %v623
    %v691 = vpop.f32.mrb[0].mxu0
    %v692 = vadd.f32 0.0, %v691
    %v693 = vpop.f32.mrb[0].mxu0
    %v694 = vadd.f32 0.0, %v693
    %695 = vdwg.mxu0
    %v696 = vadd.f32 %v620, %v692
    %v697 = vadd.f32 %v621, %v694
    %v698 = vadd.f32 %v696, %v214
    %v699 = vadd.f32 %v697, %v218
    %v700 = vxor.u32 %v698, 2147483648
    %v701 = vxor.u32 %v699, 2147483648
    %v702 = vmul.f32 %v700, 1.442695
    %v703 = vpow.pop %v702
    %v704 = vmul.f32 %v701, 1.442695
    %v705 = vpow.pop %v704
    %v706 = vadd.f32 %v703, 1.0
    %v707 = vadd.f32 %v705, 1.0
    %v708 = vrcp.pop %v706
    %v709 = vmul.f32 1.0, %v708
    %v710 = vrcp.pop %v707
    %v711 = vmul.f32 1.0, %v710
    %v712 = vtanh.pop %v699
    %v713 = vmul.f32 %v709, %v488
    %715 = vrot.lane.b32.xlu0 %v712, 64
    %v716 = vpop.permute.xlu0 %715
    %v718 = vmul.f32 %v709, %v716
    %720 = vrot.lane.b32.xlu0 %v718, 64
    %v721 = vpop.permute.xlu0 %720
    %v723 = vadd.f32 %v713, %v721
    %v724 = vtanh.pop %v723
    %726 = vrot.lane.b32.xlu0 %v724, 64
    %v727 = vpop.permute.xlu0 %726
    %v729 = vmul.f32 %v711, %v727
    %731 = vrot.lane.b32.xlu0 %v600, 64
    %v732 = vpop.permute.xlu0 %731
    %v734 = vsel %vm133, %v729, %v732
    %735 = vmatprep.subr.mxu0 %v83
    %736 = vmatpush1.msra.mxu0 %v82
    %737 = vmatprep.subr.mxu0 %v85
    %738 = vmatpush1.msra.mxu0 %v84
    %739 = vmatprep.subr.mxu0 %v87
    %740 = vmatpush1.msra.mxu0 %v86
    %741 = vmatprep.subr.mxu0 %v89
    %742 = vmatpush1.msra.mxu0 %v88
    %743 = vmatprep.subr.mxu0 %v91
    %744 = vmatpush1.msra.mxu0 %v90
    %745 = vmatprep.subr.mxu0 %v93
    %746 = vmatpush1.msra.mxu0 %v92
    %747 = vmatprep.subr.mxu0 %v95
    %748 = vmatpush1.msra.mxu0 %v94
    %749 = vmatprep.subr.mxu0 %v97
    %750 = vmatpush1.msra.mxu0 %v96
    %751 = vmatprep.subr.mxu0 %v99
    %752 = vmatpush1.msra.mxu0 %v98
    %753 = vmatprep.subr.mxu0 %v101
    %754 = vmatpush1.msra.mxu0 %v100
    %755 = vmatprep.subr.mxu0 %v103
    %756 = vmatpush1.msra.mxu0 %v102
    %757 = vmatprep.subr.mxu0 %v105
    %758 = vmatpush1.msra.mxu0 %v104
    %759 = vmatprep.subr.mxu0 %v107
    %760 = vmatpush1.msra.mxu0 %v106
    %761 = vmatprep.subr.mxu0 %v109
    %762 = vmatpush1.msra.mxu0 %v108
    %763 = vmatprep.subr.mxu0 %v111
    %764 = vmatpush1.msra.mxu0 %v110
    %765 = vmatprep.subr.mxu0 %v113
    %766 = vmatpush1.msra.mxu0 %v112
    %767 = vmatprep.subr.mxu0 0.0
    %768 = vmatpush1.msra.mxu0 0.0
    %769 = vmatprep.subr.mxu0 0.0
    %770 = vmatpush1.msra.mxu0 0.0
    %771 = vmatprep.subr.mxu0 0.0
    %772 = vmatpush1.msra.mxu0 0.0
    %773 = vmatprep.subr.mxu0 0.0
    %774 = vmatpush1.msra.mxu0 0.0
    %775 = vmatprep.subr.mxu0 0.0
    %776 = vmatpush1.msra.mxu0 0.0
    %777 = vmatprep.subr.mxu0 0.0
    %778 = vmatpush1.msra.mxu0 0.0
    %779 = vmatprep.subr.mxu0 0.0
    %780 = vmatpush1.msra.mxu0 0.0
    %781 = vmatprep.subr.mxu0 0.0
    %782 = vmatpush1.msra.mxu0 0.0
    %783 = vmatprep.subr.mxu0 0.0
    %784 = vmatpush1.msra.mxu0 0.0
    %785 = vmatprep.subr.mxu0 0.0
    %786 = vmatpush1.msra.mxu0 0.0
    %787 = vmatprep.subr.mxu0 0.0
    %788 = vmatpush1.msra.mxu0 0.0
    %789 = vmatprep.subr.mxu0 0.0
    %790 = vmatpush1.msra.mxu0 0.0
    %791 = vmatprep.subr.mxu0 0.0
    %792 = vmatpush1.msra.mxu0 0.0
    %793 = vmatprep.subr.mxu0 0.0
    %794 = vmatpush1.msra.mxu0 0.0
    %795 = vmatprep.subr.mxu0 0.0
    %796 = vmatpush1.msra.mxu0 0.0
    %797 = vmatprep.subr.mxu0 0.0
    %798 = vmatpush1.msra.mxu0 0.0
    %799 = vmatprep.mubr.f32.mxu0 0.0
    %800 = vmatmul.mubr.f32.gmra.mrb[0].mxu0 %v734
    %v801 = vpop.f32.mrb[0].mxu0
    %v802 = vadd.f32 %v258, %v801
    %v803 = vpop.f32.mrb[0].mxu0
    %v804 = vadd.f32 %v262, %v803
    %805 = vdwg.mxu0
    %v806 = vxor.u32 %v802, 2147483648
    %v807 = vxor.u32 %v804, 2147483648
    %v808 = vmul.f32 %v806, 1.442695
    %v809 = vpow.pop %v808
    %v810 = vmul.f32 %v807, 1.442695
    %v811 = vpow.pop %v810
    %v812 = vadd.f32 %v809, 1.0
    %v813 = vadd.f32 %v811, 1.0
    %v814 = vrcp.pop %v812
    %v815 = vmul.f32 1.0, %v814
    %v816 = vrcp.pop %v813
    %v817 = vmul.f32 1.0, %v816
    %v818 = vtanh.pop %v804
    %v819 = vmul.f32 %v815, %v594
    %821 = vrot.lane.b32.xlu0 %v818, 64
    %v822 = vpop.permute.xlu0 %821
    %v824 = vmul.f32 %v815, %v822
    %826 = vrot.lane.b32.xlu0 %v824, 64
    %v827 = vpop.permute.xlu0 %826
    %v829 = vadd.f32 %v819, %v827
    %v830 = vtanh.pop %v829
    %832 = vrot.lane.b32.xlu0 %v830, 64
    %v833 = vpop.permute.xlu0 %832
    %v835 = vmul.f32 %v817, %v833
    %v836 = vmin.f32 %v835, 0.0
    %v837 = vand.u32 2147483647, %v835
    %v838 = vsub.f32 0.0, %v837
    %v839 = vmul.f32 %v838, 1.442695
    %v840 = vpow.pop %v839
    %v841 = vadd.f32 %v840, 1.0
    %v842 = vlog2.pop %v841
    %v843 = vmul.f32 %v842, 0.6931472
    %v844 = vmul.f32 -0.5, %v840
    %v845 = vadd.f32 %v844, 1.0
    %v846 = vmul.f32 %v845, %v840
    %v847 = vand.u32 2147483647, %v840
    %vm848 = vcmp.lt.f32.partialorder %v847, 0.0004427343
    %v849 = vsel %vm848, %v846, %v843
    %v850 = vsub.f32 %v836, %v849
    %851 = vset.pattern.permute.xlu0 3
    %852 = vperm.xlu0 %851, %v63
    %v853 = vpop.permute.xlu0 %852
    %v855 = vmul.f32 %v853, %v124
    %v856 = vmul.f32 %v853, %v128
    %v858 = vsel %vm133, %v729, 0
    %860 = vmatprep.subr.mxu0 %v66
    %861 = vmatpush1.msra.mxu0 %v65
    %862 = vmatprep.subr.mxu0 %v68
    %863 = vmatpush1.msra.mxu0 %v67
    %864 = vmatprep.subr.mxu0 %v70
    %865 = vmatpush1.msra.mxu0 %v69
    %866 = vmatprep.subr.mxu0 %v72
    %867 = vmatpush1.msra.mxu0 %v71
    %868 = vmatprep.subr.mxu0 %v74
    %869 = vmatpush1.msra.mxu0 %v73
    %870 = vmatprep.subr.mxu0 %v76
    %871 = vmatpush1.msra.mxu0 %v75
    %872 = vmatprep.subr.mxu0 %v78
    %873 = vmatpush1.msra.mxu0 %v77
    %874 = vmatprep.subr.mxu0 %v80
    %875 = vmatpush1.msra.mxu0 %v79
    %876 = vmatprep.subr.mxu0 0.0
    %877 = vmatpush1.msra.mxu0 0.0
    %878 = vmatprep.subr.mxu0 0.0
    %879 = vmatpush1.msra.mxu0 0.0
    %880 = vmatprep.subr.mxu0 0.0
    %881 = vmatpush1.msra.mxu0 0.0
    %882 = vmatprep.subr.mxu0 0.0
    %883 = vmatpush1.msra.mxu0 0.0
    %884 = vmatprep.subr.mxu0 0.0
    %885 = vmatpush1.msra.mxu0 0.0
    %886 = vmatprep.subr.mxu0 0.0
    %887 = vmatpush1.msra.mxu0 0.0
    %888 = vmatprep.subr.mxu0 0.0
    %889 = vmatpush1.msra.mxu0 0.0
    %890 = vmatprep.subr.mxu0 0.0
    %891 = vmatpush1.msra.mxu0 0.0
    %892 = vmatprep.subr.mxu0 0.0
    %893 = vmatpush1.msra.mxu0 0.0
    %894 = vmatprep.subr.mxu0 0.0
    %895 = vmatpush1.msra.mxu0 0.0
    %896 = vmatprep.subr.mxu0 0.0
    %897 = vmatpush1.msra.mxu0 0.0
    %898 = vmatprep.subr.mxu0 0.0
    %899 = vmatpush1.msra.mxu0 0.0
    %900 = vmatprep.subr.mxu0 0.0
    %901 = vmatpush1.msra.mxu0 0.0
    %902 = vmatprep.subr.mxu0 0.0
    %903 = vmatpush1.msra.mxu0 0.0
    %904 = vmatprep.subr.mxu0 0.0
    %905 = vmatpush1.msra.mxu0 0.0
    %906 = vmatprep.subr.mxu0 0.0
    %907 = vmatpush1.msra.mxu0 0.0
    %908 = vmatprep.subr.mxu0 0.0
    %909 = vmatpush1.msra.mxu0 0.0
    %910 = vmatprep.subr.mxu0 0.0
    %911 = vmatpush1.msra.mxu0 0.0
    %912 = vmatprep.subr.mxu0 0.0
    %913 = vmatpush1.msra.mxu0 0.0
    %914 = vmatprep.subr.mxu0 0.0
    %915 = vmatpush1.msra.mxu0 0.0
    %916 = vmatprep.subr.mxu0 0.0
    %917 = vmatpush1.msra.mxu0 0.0
    %918 = vmatprep.subr.mxu0 0.0
    %919 = vmatpush1.msra.mxu0 0.0
    %920 = vmatprep.subr.mxu0 0.0
    %921 = vmatpush1.msra.mxu0 0.0
    %922 = vmatprep.subr.mxu0 0.0
    %923 = vmatpush1.msra.mxu0 0.0
    %924 = vmatprep.mubr.f32.mxu0 0.0
    %925 = vmatmul.mubr.f32.gmra.mrb[0].mxu0 %v858
    %v926 = vpop.f32.mrb[0].mxu0
    %v927 = vadd.f32 0.0, %v926
    %v928 = vpop.f32.mrb[0].mxu0
    %v929 = vadd.f32 0.0, %v928
    %930 = vdwg.mxu0
    %v931 = vadd.f32 %v855, %v927
    %v932 = vadd.f32 %v856, %v929
    %v933 = vadd.f32 %v931, %v214
    %v934 = vadd.f32 %v932, %v218
    %v935 = vxor.u32 %v933, 2147483648
    %v936 = vxor.u32 %v934, 2147483648
    %v937 = vmul.f32 %v935, 1.442695
    %v938 = vpow.pop %v937
    %v939 = vmul.f32 %v936, 1.442695
    %v940 = vpow.pop %v939
    %v941 = vadd.f32 %v938, 1.0
    %v942 = vadd.f32 %v940, 1.0
    %v943 = vrcp.pop %v941
    %v944 = vmul.f32 1.0, %v943
    %v945 = vrcp.pop %v942
    %v946 = vmul.f32 1.0, %v945
    %v947 = vtanh.pop %v934
    %v948 = vmul.f32 %v944, %v723
    %950 = vrot.lane.b32.xlu0 %v947, 64
    %v951 = vpop.permute.xlu0 %950
    %v953 = vmul.f32 %v944, %v951
    %955 = vrot.lane.b32.xlu0 %v953, 64
    %v956 = vpop.permute.xlu0 %955
    %v958 = vadd.f32 %v948, %v956
    %v959 = vtanh.pop %v958
    %961 = vrot.lane.b32.xlu0 %v959, 64
    %v962 = vpop.permute.xlu0 %961
    %v964 = vmul.f32 %v946, %v962
    %966 = vrot.lane.b32.xlu0 %v835, 64
    %v967 = vpop.permute.xlu0 %966
    %v969 = vsel %vm133, %v964, %v967
    %970 = vmatprep.subr.mxu0 %v83
    %971 = vmatpush1.msra.mxu0 %v82
    %972 = vmatprep.subr.mxu0 %v85
    %973 = vmatpush1.msra.mxu0 %v84
    %974 = vmatprep.subr.mxu0 %v87
    %975 = vmatpush1.msra.mxu0 %v86
    %976 = vmatprep.subr.mxu0 %v89
    %977 = vmatpush1.msra.mxu0 %v88
    %978 = vmatprep.subr.mxu0 %v91
    %979 = vmatpush1.msra.mxu0 %v90
    %980 = vmatprep.subr.mxu0 %v93
    %981 = vmatpush1.msra.mxu0 %v92
    %982 = vmatprep.subr.mxu0 %v95
    %983 = vmatpush1.msra.mxu0 %v94
    %984 = vmatprep.subr.mxu0 %v97
    %985 = vmatpush1.msra.mxu0 %v96
    %986 = vmatprep.subr.mxu0 %v99
    %987 = vmatpush1.msra.mxu0 %v98
    %988 = vmatprep.subr.mxu0 %v101
    %989 = vmatpush1.msra.mxu0 %v100
    %990 = vmatprep.subr.mxu0 %v103
    %991 = vmatpush1.msra.mxu0 %v102
    %992 = vmatprep.subr.mxu0 %v105
    %993 = vmatpush1.msra.mxu0 %v104
    %994 = vmatprep.subr.mxu0 %v107
    %995 = vmatpush1.msra.mxu0 %v106
    %996 = vmatprep.subr.mxu0 %v109
    %997 = vmatpush1.msra.mxu0 %v108
    %998 = vmatprep.subr.mxu0 %v111
    %999 = vmatpush1.msra.mxu0 %v110
    %1000 = vmatprep.subr.mxu0 %v113
    %1001 = vmatpush1.msra.mxu0 %v112
    %1002 = vmatprep.subr.mxu0 0.0
    %1003 = vmatpush1.msra.mxu0 0.0
    %1004 = vmatprep.subr.mxu0 0.0
    %1005 = vmatpush1.msra.mxu0 0.0
    %1006 = vmatprep.subr.mxu0 0.0
    %1007 = vmatpush1.msra.mxu0 0.0
    %1008 = vmatprep.subr.mxu0 0.0
    %1009 = vmatpush1.msra.mxu0 0.0
    %1010 = vmatprep.subr.mxu0 0.0
    %1011 = vmatpush1.msra.mxu0 0.0
    %1012 = vmatprep.subr.mxu0 0.0
    %1013 = vmatpush1.msra.mxu0 0.0
    %1014 = vmatprep.subr.mxu0 0.0
    %1015 = vmatpush1.msra.mxu0 0.0
    %1016 = vmatprep.subr.mxu0 0.0
    %1017 = vmatpush1.msra.mxu0 0.0
    %1018 = vmatprep.subr.mxu0 0.0
    %1019 = vmatpush1.msra.mxu0 0.0
    %1020 = vmatprep.subr.mxu0 0.0
    %1021 = vmatpush1.msra.mxu0 0.0
    %1022 = vmatprep.subr.mxu0 0.0
    %1023 = vmatpush1.msra.mxu0 0.0
    %1024 = vmatprep.subr.mxu0 0.0
    %1025 = vmatpush1.msra.mxu0 0.0
    %1026 = vmatprep.subr.mxu0 0.0
    %1027 = vmatpush1.msra.mxu0 0.0
    %1028 = vmatprep.subr.mxu0 0.0
    %1029 = vmatpush1.msra.mxu0 0.0
    %1030 = vmatprep.subr.mxu0 0.0
    %1031 = vmatpush1.msra.mxu0 0.0
    %1032 = vmatprep.subr.mxu0 0.0
    %1033 = vmatpush1.msra.mxu0 0.0
    %1034 = vmatprep.mubr.f32.mxu0 0.0
    %1035 = vmatmul.mubr.f32.gmra.mrb[0].mxu0 %v969
    %v1036 = vpop.f32.mrb[0].mxu0
    %v1037 = vadd.f32 %v258, %v1036
    %v1038 = vpop.f32.mrb[0].mxu0
    %v1039 = vadd.f32 %v262, %v1038
    %1040 = vdwg.mxu0
    %v1041 = vxor.u32 %v1037, 2147483648
    %v1042 = vxor.u32 %v1039, 2147483648
    %v1043 = vmul.f32 %v1041, 1.442695
    %v1044 = vpow.pop %v1043
    %v1045 = vmul.f32 %v1042, 1.442695
    %v1046 = vpow.pop %v1045
    %v1047 = vadd.f32 %v1044, 1.0
    %v1048 = vadd.f32 %v1046, 1.0
    %v1049 = vrcp.pop %v1047
    %v1050 = vmul.f32 1.0, %v1049
    %v1051 = vrcp.pop %v1048
    %v1052 = vmul.f32 1.0, %v1051
    %v1053 = vtanh.pop %v1039
    %v1054 = vmul.f32 %v1050, %v829
    %1056 = vrot.lane.b32.xlu0 %v1053, 64
    %v1057 = vpop.permute.xlu0 %1056
    %v1059 = vmul.f32 %v1050, %v1057
    %1061 = vrot.lane.b32.xlu0 %v1059, 64
    %v1062 = vpop.permute.xlu0 %1061
    %v1064 = vadd.f32 %v1054, %v1062
    %v1065 = vtanh.pop %v1064
    %1067 = vrot.lane.b32.xlu0 %v1065, 64
    %v1068 = vpop.permute.xlu0 %1067
    %v1070 = vmul.f32 %v1052, %v1068
    %v1071 = vmin.f32 %v1070, 0.0
    %v1072 = vand.u32 2147483647, %v1070
    %v1073 = vsub.f32 0.0, %v1072
    %v1074 = vmul.f32 %v1073, 1.442695
    %v1075 = vpow.pop %v1074
    %v1076 = vadd.f32 %v1075, 1.0
    %v1077 = vlog2.pop %v1076
    %v1078 = vmul.f32 %v1077, 0.6931472
    %v1079 = vmul.f32 -0.5, %v1075
    %v1080 = vadd.f32 %v1079, 1.0
    %v1081 = vmul.f32 %v1080, %v1075
    %v1082 = vand.u32 2147483647, %v1075
    %vm1083 = vcmp.lt.f32.partialorder %v1082, 0.0004427343
    %v1084 = vsel %vm1083, %v1081, %v1078
    %v1085 = vsub.f32 %v1071, %v1084
    %1086 = vset.pattern.permute.xlu0 4
    %1087 = vperm.xlu0 %1086, %v63
    %v1088 = vpop.permute.xlu0 %1087
    %v1090 = vmul.f32 %v1088, %v124
    %v1091 = vmul.f32 %v1088, %v128
    %v1093 = vsel %vm133, %v964, 0
    %1095 = vmatprep.subr.mxu0 %v66
    %1096 = vmatpush1.msra.mxu0 %v65
    %1097 = vmatprep.subr.mxu0 %v68
    %1098 = vmatpush1.msra.mxu0 %v67
    %1099 = vmatprep.subr.mxu0 %v70
    %1100 = vmatpush1.msra.mxu0 %v69
    %1101 = vmatprep.subr.mxu0 %v72
    %1102 = vmatpush1.msra.mxu0 %v71
    %1103 = vmatprep.subr.mxu0 %v74
    %1104 = vmatpush1.msra.mxu0 %v73
    %1105 = vmatprep.subr.mxu0 %v76
    %1106 = vmatpush1.msra.mxu0 %v75
    %1107 = vmatprep.subr.mxu0 %v78
    %1108 = vmatpush1.msra.mxu0 %v77
    %1109 = vmatprep.subr.mxu0 %v80
    %1110 = vmatpush1.msra.mxu0 %v79
    %1111 = vmatprep.subr.mxu0 0.0
    %1112 = vmatpush1.msra.mxu0 0.0
    %1113 = vmatprep.subr.mxu0 0.0
    %1114 = vmatpush1.msra.mxu0 0.0
    %1115 = vmatprep.subr.mxu0 0.0
    %1116 = vmatpush1.msra.mxu0 0.0
    %1117 = vmatprep.subr.mxu0 0.0
    %1118 = vmatpush1.msra.mxu0 0.0
    %1119 = vmatprep.subr.mxu0 0.0
    %1120 = vmatpush1.msra.mxu0 0.0
    %1121 = vmatprep.subr.mxu0 0.0
    %1122 = vmatpush1.msra.mxu0 0.0
    %1123 = vmatprep.subr.mxu0 0.0
    %1124 = vmatpush1.msra.mxu0 0.0
    %1125 = vmatprep.subr.mxu0 0.0
    %1126 = vmatpush1.msra.mxu0 0.0
    %1127 = vmatprep.subr.mxu0 0.0
    %1128 = vmatpush1.msra.mxu0 0.0
    %1129 = vmatprep.subr.mxu0 0.0
    %1130 = vmatpush1.msra.mxu0 0.0
    %1131 = vmatprep.subr.mxu0 0.0
    %1132 = vmatpush1.msra.mxu0 0.0
    %1133 = vmatprep.subr.mxu0 0.0
    %1134 = vmatpush1.msra.mxu0 0.0
    %1135 = vmatprep.subr.mxu0 0.0
    %1136 = vmatpush1.msra.mxu0 0.0
    %1137 = vmatprep.subr.mxu0 0.0
    %1138 = vmatpush1.msra.mxu0 0.0
    %1139 = vmatprep.subr.mxu0 0.0
    %1140 = vmatpush1.msra.mxu0 0.0
    %1141 = vmatprep.subr.mxu0 0.0
    %1142 = vmatpush1.msra.mxu0 0.0
    %1143 = vmatprep.subr.mxu0 0.0
    %1144 = vmatpush1.msra.mxu0 0.0
    %1145 = vmatprep.subr.mxu0 0.0
    %1146 = vmatpush1.msra.mxu0 0.0
    %1147 = vmatprep.subr.mxu0 0.0
    %1148 = vmatpush1.msra.mxu0 0.0
    %1149 = vmatprep.subr.mxu0 0.0
    %1150 = vmatpush1.msra.mxu0 0.0
    %1151 = vmatprep.subr.mxu0 0.0
    %1152 = vmatpush1.msra.mxu0 0.0
    %1153 = vmatprep.subr.mxu0 0.0
    %1154 = vmatpush1.msra.mxu0 0.0
    %1155 = vmatprep.subr.mxu0 0.0
    %1156 = vmatpush1.msra.mxu0 0.0
    %1157 = vmatprep.subr.mxu0 0.0
    %1158 = vmatpush1.msra.mxu0 0.0
    %1159 = vmatprep.mubr.f32.mxu0 0.0
    %1160 = vmatmul.mubr.f32.gmra.mrb[0].mxu0 %v1093
    %v1161 = vpop.f32.mrb[0].mxu0
    %v1162 = vadd.f32 0.0, %v1161
    %v1163 = vpop.f32.mrb[0].mxu0
    %v1164 = vadd.f32 0.0, %v1163
    %1165 = vdwg.mxu0
    %v1166 = vadd.f32 %v1090, %v1162
    %v1167 = vadd.f32 %v1091, %v1164
    %v1168 = vadd.f32 %v1166, %v214
    %v1169 = vadd.f32 %v1167, %v218
    %v1170 = vxor.u32 %v1168, 2147483648
    %v1171 = vxor.u32 %v1169, 2147483648
    %v1172 = vmul.f32 %v1170, 1.442695
    %v1173 = vpow.pop %v1172
    %v1174 = vmul.f32 %v1171, 1.442695
    %v1175 = vpow.pop %v1174
    %v1176 = vadd.f32 %v1173, 1.0
    %v1177 = vadd.f32 %v1175, 1.0
    %v1178 = vrcp.pop %v1176
    %v1179 = vmul.f32 1.0, %v1178
    %v1180 = vrcp.pop %v1177
    %v1181 = vmul.f32 1.0, %v1180
    %v1182 = vtanh.pop %v1169
    %v1183 = vmul.f32 %v1179, %v958
    %1185 = vrot.lane.b32.xlu0 %v1182, 64
    %v1186 = vpop.permute.xlu0 %1185
    %v1188 = vmul.f32 %v1179, %v1186
    %1190 = vrot.lane.b32.xlu0 %v1188, 64
    %v1191 = vpop.permute.xlu0 %1190
    %v1193 = vadd.f32 %v1183, %v1191
    %v1194 = vtanh.pop %v1193
    %1196 = vrot.lane.b32.xlu0 %v1194, 64
    %v1197 = vpop.permute.xlu0 %1196
    %v1199 = vmul.f32 %v1181, %v1197
    %1201 = vrot.lane.b32.xlu0 %v1070, 64
    %v1202 = vpop.permute.xlu0 %1201
    %v1204 = vsel %vm133, %v1199, %v1202
    %1205 = vmatprep.subr.mxu0 %v83
    %1206 = vmatpush1.msra.mxu0 %v82
    %1207 = vmatprep.subr.mxu0 %v85
    %1208 = vmatpush1.msra.mxu0 %v84
    %1209 = vmatprep.subr.mxu0 %v87
    %1210 = vmatpush1.msra.mxu0 %v86
    %1211 = vmatprep.subr.mxu0 %v89
    %1212 = vmatpush1.msra.mxu0 %v88
    %1213 = vmatprep.subr.mxu0 %v91
    %1214 = vmatpush1.msra.mxu0 %v90
    %1215 = vmatprep.subr.mxu0 %v93
    %1216 = vmatpush1.msra.mxu0 %v92
    %1217 = vmatprep.subr.mxu0 %v95
    %1218 = vmatpush1.msra.mxu0 %v94
    %1219 = vmatprep.subr.mxu0 %v97
    %1220 = vmatpush1.msra.mxu0 %v96
    %1221 = vmatprep.subr.mxu0 %v99
    %1222 = vmatpush1.msra.mxu0 %v98
    %1223 = vmatprep.subr.mxu0 %v101
    %1224 = vmatpush1.msra.mxu0 %v100
    %1225 = vmatprep.subr.mxu0 %v103
    %1226 = vmatpush1.msra.mxu0 %v102
    %1227 = vmatprep.subr.mxu0 %v105
    %1228 = vmatpush1.msra.mxu0 %v104
    %1229 = vmatprep.subr.mxu0 %v107
    %1230 = vmatpush1.msra.mxu0 %v106
    %1231 = vmatprep.subr.mxu0 %v109
    %1232 = vmatpush1.msra.mxu0 %v108
    %1233 = vmatprep.subr.mxu0 %v111
    %1234 = vmatpush1.msra.mxu0 %v110
    %1235 = vmatprep.subr.mxu0 %v113
    %1236 = vmatpush1.msra.mxu0 %v112
    %1237 = vmatprep.subr.mxu0 0.0
    %1238 = vmatpush1.msra.mxu0 0.0
    %1239 = vmatprep.subr.mxu0 0.0
    %1240 = vmatpush1.msra.mxu0 0.0
    %1241 = vmatprep.subr.mxu0 0.0
    %1242 = vmatpush1.msra.mxu0 0.0
    %1243 = vmatprep.subr.mxu0 0.0
    %1244 = vmatpush1.msra.mxu0 0.0
    %1245 = vmatprep.subr.mxu0 0.0
    %1246 = vmatpush1.msra.mxu0 0.0
    %1247 = vmatprep.subr.mxu0 0.0
    %1248 = vmatpush1.msra.mxu0 0.0
    %1249 = vmatprep.subr.mxu0 0.0
    %1250 = vmatpush1.msra.mxu0 0.0
    %1251 = vmatprep.subr.mxu0 0.0
    %1252 = vmatpush1.msra.mxu0 0.0
    %1253 = vmatprep.subr.mxu0 0.0
    %1254 = vmatpush1.msra.mxu0 0.0
    %1255 = vmatprep.subr.mxu0 0.0
    %1256 = vmatpush1.msra.mxu0 0.0
    %1257 = vmatprep.subr.mxu0 0.0
    %1258 = vmatpush1.msra.mxu0 0.0
    %1259 = vmatprep.subr.mxu0 0.0
    %1260 = vmatpush1.msra.mxu0 0.0
    %1261 = vmatprep.subr.mxu0 0.0
    %1262 = vmatpush1.msra.mxu0 0.0
    %1263 = vmatprep.subr.mxu0 0.0
    %1264 = vmatpush1.msra.mxu0 0.0
    %1265 = vmatprep.subr.mxu0 0.0
    %1266 = vmatpush1.msra.mxu0 0.0
    %1267 = vmatprep.subr.mxu0 0.0
    %1268 = vmatpush1.msra.mxu0 0.0
    %1269 = vmatprep.mubr.f32.mxu0 0.0
    %1270 = vmatmul.mubr.f32.gmra.mrb[0].mxu0 %v1204
    %v1271 = vpop.f32.mrb[0].mxu0
    %v1272 = vadd.f32 %v258, %v1271
    %v1273 = vpop.f32.mrb[0].mxu0
    %v1274 = vadd.f32 %v262, %v1273
    %1275 = vdwg.mxu0
    %v1276 = vxor.u32 %v1272, 2147483648
    %v1277 = vxor.u32 %v1274, 2147483648
    %v1278 = vmul.f32 %v1276, 1.442695
    %v1279 = vpow.pop %v1278
    %v1280 = vmul.f32 %v1277, 1.442695
    %v1281 = vpow.pop %v1280
    %v1282 = vadd.f32 %v1279, 1.0
    %v1283 = vadd.f32 %v1281, 1.0
    %v1284 = vrcp.pop %v1282
    %v1285 = vmul.f32 1.0, %v1284
    %v1286 = vrcp.pop %v1283
    %v1287 = vmul.f32 1.0, %v1286
    %v1288 = vtanh.pop %v1274
    %v1289 = vmul.f32 %v1285, %v1064
    %1291 = vrot.lane.b32.xlu0 %v1288, 64
    %v1292 = vpop.permute.xlu0 %1291
    %v1294 = vmul.f32 %v1285, %v1292
    %1296 = vrot.lane.b32.xlu0 %v1294, 64
    %v1297 = vpop.permute.xlu0 %1296
    %v1299 = vadd.f32 %v1289, %v1297
    %v1300 = vtanh.pop %v1299
    %1302 = vrot.lane.b32.xlu0 %v1300, 64
    %v1303 = vpop.permute.xlu0 %1302
    %v1305 = vmul.f32 %v1287, %v1303
    %v1306 = vmin.f32 %v1305, 0.0
    %v1307 = vand.u32 2147483647, %v1305
    %v1308 = vsub.f32 0.0, %v1307
    %v1309 = vmul.f32 %v1308, 1.442695
    %v1310 = vpow.pop %v1309
    %v1311 = vadd.f32 %v1310, 1.0
    %v1312 = vlog2.pop %v1311
    %v1313 = vmul.f32 %v1312, 0.6931472
    %v1314 = vmul.f32 -0.5, %v1310
    %v1315 = vadd.f32 %v1314, 1.0
    %v1316 = vmul.f32 %v1315, %v1310
    %v1317 = vand.u32 2147483647, %v1310
    %vm1318 = vcmp.lt.f32.partialorder %v1317, 0.0004427343
    %v1319 = vsel %vm1318, %v1316, %v1313
    %v1320 = vsub.f32 %v1306, %v1319
    %1321 = vset.pattern.permute.xlu0 5
    %1322 = vperm.xlu0 %1321, %v63
    %v1323 = vpop.permute.xlu0 %1322
    %v1325 = vmul.f32 %v1323, %v124
    %v1326 = vmul.f32 %v1323, %v128
    %v1328 = vsel %vm133, %v1199, 0
    %1330 = vmatprep.subr.mxu0 %v66
    %1331 = vmatpush1.msra.mxu0 %v65
    %1332 = vmatprep.subr.mxu0 %v68
    %1333 = vmatpush1.msra.mxu0 %v67
    %1334 = vmatprep.subr.mxu0 %v70
    %1335 = vmatpush1.msra.mxu0 %v69
    %1336 = vmatprep.subr.mxu0 %v72
    %1337 = vmatpush1.msra.mxu0 %v71
    %1338 = vmatprep.subr.mxu0 %v74
    %1339 = vmatpush1.msra.mxu0 %v73
    %1340 = vmatprep.subr.mxu0 %v76
    %1341 = vmatpush1.msra.mxu0 %v75
    %1342 = vmatprep.subr.mxu0 %v78
    %1343 = vmatpush1.msra.mxu0 %v77
    %1344 = vmatprep.subr.mxu0 %v80
    %1345 = vmatpush1.msra.mxu0 %v79
    %1346 = vmatprep.subr.mxu0 0.0
    %1347 = vmatpush1.msra.mxu0 0.0
    %1348 = vmatprep.subr.mxu0 0.0
    %1349 = vmatpush1.msra.mxu0 0.0
    %1350 = vmatprep.subr.mxu0 0.0
    %1351 = vmatpush1.msra.mxu0 0.0
    %1352 = vmatprep.subr.mxu0 0.0
    %1353 = vmatpush1.msra.mxu0 0.0
    %1354 = vmatprep.subr.mxu0 0.0
    %1355 = vmatpush1.msra.mxu0 0.0
    %1356 = vmatprep.subr.mxu0 0.0
    %1357 = vmatpush1.msra.mxu0 0.0
    %1358 = vmatprep.subr.mxu0 0.0
    %1359 = vmatpush1.msra.mxu0 0.0
    %1360 = vmatprep.subr.mxu0 0.0
    %1361 = vmatpush1.msra.mxu0 0.0
    %1362 = vmatprep.subr.mxu0 0.0
    %1363 = vmatpush1.msra.mxu0 0.0
    %1364 = vmatprep.subr.mxu0 0.0
    %1365 = vmatpush1.msra.mxu0 0.0
    %1366 = vmatprep.subr.mxu0 0.0
    %1367 = vmatpush1.msra.mxu0 0.0
    %1368 = vmatprep.subr.mxu0 0.0
    %1369 = vmatpush1.msra.mxu0 0.0
    %1370 = vmatprep.subr.mxu0 0.0
    %1371 = vmatpush1.msra.mxu0 0.0
    %1372 = vmatprep.subr.mxu0 0.0
    %1373 = vmatpush1.msra.mxu0 0.0
    %1374 = vmatprep.subr.mxu0 0.0
    %1375 = vmatpush1.msra.mxu0 0.0
    %1376 = vmatprep.subr.mxu0 0.0
    %1377 = vmatpush1.msra.mxu0 0.0
    %1378 = vmatprep.subr.mxu0 0.0
    %1379 = vmatpush1.msra.mxu0 0.0
    %1380 = vmatprep.subr.mxu0 0.0
    %1381 = vmatpush1.msra.mxu0 0.0
    %1382 = vmatprep.subr.mxu0 0.0
    %1383 = vmatpush1.msra.mxu0 0.0
    %1384 = vmatprep.subr.mxu0 0.0
    %1385 = vmatpush1.msra.mxu0 0.0
    %1386 = vmatprep.subr.mxu0 0.0
    %1387 = vmatpush1.msra.mxu0 0.0
    %1388 = vmatprep.subr.mxu0 0.0
    %1389 = vmatpush1.msra.mxu0 0.0
    %1390 = vmatprep.subr.mxu0 0.0
    %1391 = vmatpush1.msra.mxu0 0.0
    %1392 = vmatprep.subr.mxu0 0.0
    %1393 = vmatpush1.msra.mxu0 0.0
    %1394 = vmatprep.mubr.f32.mxu0 0.0
    %1395 = vmatmul.mubr.f32.gmra.mrb[0].mxu0 %v1328
    %v1396 = vpop.f32.mrb[0].mxu0
    %v1397 = vadd.f32 0.0, %v1396
    %v1398 = vpop.f32.mrb[0].mxu0
    %v1399 = vadd.f32 0.0, %v1398
    %1400 = vdwg.mxu0
    %v1401 = vadd.f32 %v1325, %v1397
    %v1402 = vadd.f32 %v1326, %v1399
    %v1403 = vadd.f32 %v1401, %v214
    %v1404 = vadd.f32 %v1402, %v218
    %v1405 = vxor.u32 %v1403, 2147483648
    %v1406 = vxor.u32 %v1404, 2147483648
    %v1407 = vmul.f32 %v1405, 1.442695
    %v1408 = vpow.pop %v1407
    %v1409 = vmul.f32 %v1406, 1.442695
    %v1410 = vpow.pop %v1409
    %v1411 = vadd.f32 %v1408, 1.0
    %v1412 = vadd.f32 %v1410, 1.0
    %v1413 = vrcp.pop %v1411
    %v1414 = vmul.f32 1.0, %v1413
    %v1415 = vrcp.pop %v1412
    %v1416 = vmul.f32 1.0, %v1415
    %v1417 = vtanh.pop %v1404
    %v1418 = vmul.f32 %v1414, %v1193
    %1420 = vrot.lane.b32.xlu0 %v1417, 64
    %v1421 = vpop.permute.xlu0 %1420
    %v1423 = vmul.f32 %v1414, %v1421
    %1425 = vrot.lane.b32.xlu0 %v1423, 64
    %v1426 = vpop.permute.xlu0 %1425
    %v1428 = vadd.f32 %v1418, %v1426
    %v1429 = vtanh.pop %v1428
    %1431 = vrot.lane.b32.xlu0 %v1429, 64
    %v1432 = vpop.permute.xlu0 %1431
    %v1434 = vmul.f32 %v1416, %v1432
    %1436 = vrot.lane.b32.xlu0 %v1305, 64
    %v1437 = vpop.permute.xlu0 %1436
    %v1439 = vsel %vm133, %v1434, %v1437
    %1440 = vmatprep.subr.mxu0 %v83
    %1441 = vmatpush1.msra.mxu0 %v82
    %1442 = vmatprep.subr.mxu0 %v85
    %1443 = vmatpush1.msra.mxu0 %v84
    %1444 = vmatprep.subr.mxu0 %v87
    %1445 = vmatpush1.msra.mxu0 %v86
    %1446 = vmatprep.subr.mxu0 %v89
    %1447 = vmatpush1.msra.mxu0 %v88
    %1448 = vmatprep.subr.mxu0 %v91
    %1449 = vmatpush1.msra.mxu0 %v90
    %1450 = vmatprep.subr.mxu0 %v93
    %1451 = vmatpush1.msra.mxu0 %v92
    %1452 = vmatprep.subr.mxu0 %v95
    %1453 = vmatpush1.msra.mxu0 %v94
    %1454 = vmatprep.subr.mxu0 %v97
    %1455 = vmatpush1.msra.mxu0 %v96
    %1456 = vmatprep.subr.mxu0 %v99
    %1457 = vmatpush1.msra.mxu0 %v98
    %1458 = vmatprep.subr.mxu0 %v101
    %1459 = vmatpush1.msra.mxu0 %v100
    %1460 = vmatprep.subr.mxu0 %v103
    %1461 = vmatpush1.msra.mxu0 %v102
    %1462 = vmatprep.subr.mxu0 %v105
    %1463 = vmatpush1.msra.mxu0 %v104
    %1464 = vmatprep.subr.mxu0 %v107
    %1465 = vmatpush1.msra.mxu0 %v106
    %1466 = vmatprep.subr.mxu0 %v109
    %1467 = vmatpush1.msra.mxu0 %v108
    %1468 = vmatprep.subr.mxu0 %v111
    %1469 = vmatpush1.msra.mxu0 %v110
    %1470 = vmatprep.subr.mxu0 %v113
    %1471 = vmatpush1.msra.mxu0 %v112
    %1472 = vmatprep.subr.mxu0 0.0
    %1473 = vmatpush1.msra.mxu0 0.0
    %1474 = vmatprep.subr.mxu0 0.0
    %1475 = vmatpush1.msra.mxu0 0.0
    %1476 = vmatprep.subr.mxu0 0.0
    %1477 = vmatpush1.msra.mxu0 0.0
    %1478 = vmatprep.subr.mxu0 0.0
    %1479 = vmatpush1.msra.mxu0 0.0
    %1480 = vmatprep.subr.mxu0 0.0
    %1481 = vmatpush1.msra.mxu0 0.0
    %1482 = vmatprep.subr.mxu0 0.0
    %1483 = vmatpush1.msra.mxu0 0.0
    %1484 = vmatprep.subr.mxu0 0.0
    %1485 = vmatpush1.msra.mxu0 0.0
    %1486 = vmatprep.subr.mxu0 0.0
    %1487 = vmatpush1.msra.mxu0 0.0
    %1488 = vmatprep.subr.mxu0 0.0
    %1489 = vmatpush1.msra.mxu0 0.0
    %1490 = vmatprep.subr.mxu0 0.0
    %1491 = vmatpush1.msra.mxu0 0.0
    %1492 = vmatprep.subr.mxu0 0.0
    %1493 = vmatpush1.msra.mxu0 0.0
    %1494 = vmatprep.subr.mxu0 0.0
    %1495 = vmatpush1.msra.mxu0 0.0
    %1496 = vmatprep.subr.mxu0 0.0
    %1497 = vmatpush1.msra.mxu0 0.0
    %1498 = vmatprep.subr.mxu0 0.0
    %1499 = vmatpush1.msra.mxu0 0.0
    %1500 = vmatprep.subr.mxu0 0.0
    %1501 = vmatpush1.msra.mxu0 0.0
    %1502 = vmatprep.subr.mxu0 0.0
    %1503 = vmatpush1.msra.mxu0 0.0
    %1504 = vmatprep.mubr.f32.mxu0 0.0
    %1505 = vmatmul.mubr.f32.gmra.mrb[0].mxu0 %v1439
    %v1506 = vpop.f32.mrb[0].mxu0
    %v1507 = vadd.f32 %v258, %v1506
    %v1508 = vpop.f32.mrb[0].mxu0
    %v1509 = vadd.f32 %v262, %v1508
    %1510 = vdwg.mxu0
    %v1511 = vxor.u32 %v1507, 2147483648
    %v1512 = vxor.u32 %v1509, 2147483648
    %v1513 = vmul.f32 %v1511, 1.442695
    %v1514 = vpow.pop %v1513
    %v1515 = vmul.f32 %v1512, 1.442695
    %v1516 = vpow.pop %v1515
    %v1517 = vadd.f32 %v1514, 1.0
    %v1518 = vadd.f32 %v1516, 1.0
    %v1519 = vrcp.pop %v1517
    %v1520 = vmul.f32 1.0, %v1519
    %v1521 = vrcp.pop %v1518
    %v1522 = vmul.f32 1.0, %v1521
    %v1523 = vtanh.pop %v1509
    %v1524 = vmul.f32 %v1520, %v1299
    %1526 = vrot.lane.b32.xlu0 %v1523, 64
    %v1527 = vpop.permute.xlu0 %1526
    %v1529 = vmul.f32 %v1520, %v1527
    %1531 = vrot.lane.b32.xlu0 %v1529, 64
    %v1532 = vpop.permute.xlu0 %1531
    %v1534 = vadd.f32 %v1524, %v1532
    %v1535 = vtanh.pop %v1534
    %1537 = vrot.lane.b32.xlu0 %v1535, 64
    %v1538 = vpop.permute.xlu0 %1537
    %v1540 = vmul.f32 %v1522, %v1538
    %v1541 = vmin.f32 %v1540, 0.0
    %v1542 = vand.u32 2147483647, %v1540
    %v1543 = vsub.f32 0.0, %v1542
    %v1544 = vmul.f32 %v1543, 1.442695
    %v1545 = vpow.pop %v1544
    %v1546 = vadd.f32 %v1545, 1.0
    %v1547 = vlog2.pop %v1546
    %v1548 = vmul.f32 %v1547, 0.6931472
    %v1549 = vmul.f32 -0.5, %v1545
    %v1550 = vadd.f32 %v1549, 1.0
    %v1551 = vmul.f32 %v1550, %v1545
    %v1552 = vand.u32 2147483647, %v1545
    %vm1553 = vcmp.lt.f32.partialorder %v1552, 0.0004427343
    %v1554 = vsel %vm1553, %v1551, %v1548
    %v1555 = vsub.f32 %v1541, %v1554
    %1556 = vset.pattern.permute.xlu0 6
    %1557 = vperm.xlu0 %1556, %v63
    %v1558 = vpop.permute.xlu0 %1557
    %v1560 = vmul.f32 %v1558, %v124
    %v1561 = vmul.f32 %v1558, %v128
    %v1563 = vsel %vm133, %v1434, 0
    %1565 = vmatprep.subr.mxu0 %v66
    %1566 = vmatpush1.msra.mxu0 %v65
    %1567 = vmatprep.subr.mxu0 %v68
    %1568 = vmatpush1.msra.mxu0 %v67
    %1569 = vmatprep.subr.mxu0 %v70
    %1570 = vmatpush1.msra.mxu0 %v69
    %1571 = vmatprep.subr.mxu0 %v72
    %1572 = vmatpush1.msra.mxu0 %v71
    %1573 = vmatprep.subr.mxu0 %v74
    %1574 = vmatpush1.msra.mxu0 %v73
    %1575 = vmatprep.subr.mxu0 %v76
    %1576 = vmatpush1.msra.mxu0 %v75
    %1577 = vmatprep.subr.mxu0 %v78
    %1578 = vmatpush1.msra.mxu0 %v77
    %1579 = vmatprep.subr.mxu0 %v80
    %1580 = vmatpush1.msra.mxu0 %v79
    %1581 = vmatprep.subr.mxu0 0.0
    %1582 = vmatpush1.msra.mxu0 0.0
    %1583 = vmatprep.subr.mxu0 0.0
    %1584 = vmatpush1.msra.mxu0 0.0
    %1585 = vmatprep.subr.mxu0 0.0
    %1586 = vmatpush1.msra.mxu0 0.0
    %1587 = vmatprep.subr.mxu0 0.0
    %1588 = vmatpush1.msra.mxu0 0.0
    %1589 = vmatprep.subr.mxu0 0.0
    %1590 = vmatpush1.msra.mxu0 0.0
    %1591 = vmatprep.subr.mxu0 0.0
    %1592 = vmatpush1.msra.mxu0 0.0
    %1593 = vmatprep.subr.mxu0 0.0
    %1594 = vmatpush1.msra.mxu0 0.0
    %1595 = vmatprep.subr.mxu0 0.0
    %1596 = vmatpush1.msra.mxu0 0.0
    %1597 = vmatprep.subr.mxu0 0.0
    %1598 = vmatpush1.msra.mxu0 0.0
    %1599 = vmatprep.subr.mxu0 0.0
    %1600 = vmatpush1.msra.mxu0 0.0
    %1601 = vmatprep.subr.mxu0 0.0
    %1602 = vmatpush1.msra.mxu0 0.0
    %1603 = vmatprep.subr.mxu0 0.0
    %1604 = vmatpush1.msra.mxu0 0.0
    %1605 = vmatprep.subr.mxu0 0.0
    %1606 = vmatpush1.msra.mxu0 0.0
    %1607 = vmatprep.subr.mxu0 0.0
    %1608 = vmatpush1.msra.mxu0 0.0
    %1609 = vmatprep.subr.mxu0 0.0
    %1610 = vmatpush1.msra.mxu0 0.0
    %1611 = vmatprep.subr.mxu0 0.0
    %1612 = vmatpush1.msra.mxu0 0.0
    %1613 = vmatprep.subr.mxu0 0.0
    %1614 = vmatpush1.msra.mxu0 0.0
    %1615 = vmatprep.subr.mxu0 0.0
    %1616 = vmatpush1.msra.mxu0 0.0
    %1617 = vmatprep.subr.mxu0 0.0
    %1618 = vmatpush1.msra.mxu0 0.0
    %1619 = vmatprep.subr.mxu0 0.0
    %1620 = vmatpush1.msra.mxu0 0.0
    %1621 = vmatprep.subr.mxu0 0.0
    %1622 = vmatpush1.msra.mxu0 0.0
    %1623 = vmatprep.subr.mxu0 0.0
    %1624 = vmatpush1.msra.mxu0 0.0
    %1625 = vmatprep.subr.mxu0 0.0
    %1626 = vmatpush1.msra.mxu0 0.0
    %1627 = vmatprep.subr.mxu0 0.0
    %1628 = vmatpush1.msra.mxu0 0.0
    %1629 = vmatprep.mubr.f32.mxu0 0.0
    %1630 = vmatmul.mubr.f32.gmra.mrb[0].mxu0 %v1563
    %v1631 = vpop.f32.mrb[0].mxu0
    %v1632 = vadd.f32 0.0, %v1631
    %v1633 = vpop.f32.mrb[0].mxu0
    %v1634 = vadd.f32 0.0, %v1633
    %1635 = vdwg.mxu0
    %v1636 = vadd.f32 %v1560, %v1632
    %v1637 = vadd.f32 %v1561, %v1634
    %v1638 = vadd.f32 %v1636, %v214
    %v1639 = vadd.f32 %v1637, %v218
    %v1640 = vxor.u32 %v1638, 2147483648
    %v1641 = vxor.u32 %v1639, 2147483648
    %v1642 = vmul.f32 %v1640, 1.442695
    %v1643 = vpow.pop %v1642
    %v1644 = vmul.f32 %v1641, 1.442695
    %v1645 = vpow.pop %v1644
    %v1646 = vadd.f32 %v1643, 1.0
    %v1647 = vadd.f32 %v1645, 1.0
    %v1648 = vrcp.pop %v1646
    %v1649 = vmul.f32 1.0, %v1648
    %v1650 = vrcp.pop %v1647
    %v1651 = vmul.f32 1.0, %v1650
    %v1652 = vtanh.pop %v1639
    %v1653 = vmul.f32 %v1649, %v1428
    %1655 = vrot.lane.b32.xlu0 %v1652, 64
    %v1656 = vpop.permute.xlu0 %1655
    %v1658 = vmul.f32 %v1649, %v1656
    %1660 = vrot.lane.b32.xlu0 %v1658, 64
    %v1661 = vpop.permute.xlu0 %1660
    %v1663 = vadd.f32 %v1653, %v1661
    %v1664 = vtanh.pop %v1663
    %1666 = vrot.lane.b32.xlu0 %v1664, 64
    %v1667 = vpop.permute.xlu0 %1666
    %v1669 = vmul.f32 %v1651, %v1667
    %1671 = vrot.lane.b32.xlu0 %v1540, 64
    %v1672 = vpop.permute.xlu0 %1671
    %v1674 = vsel %vm133, %v1669, %v1672
    %1675 = vmatprep.subr.mxu0 %v83
    %1676 = vmatpush1.msra.mxu0 %v82
    %1677 = vmatprep.subr.mxu0 %v85
    %1678 = vmatpush1.msra.mxu0 %v84
    %1679 = vmatprep.subr.mxu0 %v87
    %1680 = vmatpush1.msra.mxu0 %v86
    %1681 = vmatprep.subr.mxu0 %v89
    %1682 = vmatpush1.msra.mxu0 %v88
    %1683 = vmatprep.subr.mxu0 %v91
    %1684 = vmatpush1.msra.mxu0 %v90
    %1685 = vmatprep.subr.mxu0 %v93
    %1686 = vmatpush1.msra.mxu0 %v92
    %1687 = vmatprep.subr.mxu0 %v95
    %1688 = vmatpush1.msra.mxu0 %v94
    %1689 = vmatprep.subr.mxu0 %v97
    %1690 = vmatpush1.msra.mxu0 %v96
    %1691 = vmatprep.subr.mxu0 %v99
    %1692 = vmatpush1.msra.mxu0 %v98
    %1693 = vmatprep.subr.mxu0 %v101
    %1694 = vmatpush1.msra.mxu0 %v100
    %1695 = vmatprep.subr.mxu0 %v103
    %1696 = vmatpush1.msra.mxu0 %v102
    %1697 = vmatprep.subr.mxu0 %v105
    %1698 = vmatpush1.msra.mxu0 %v104
    %1699 = vmatprep.subr.mxu0 %v107
    %1700 = vmatpush1.msra.mxu0 %v106
    %1701 = vmatprep.subr.mxu0 %v109
    %1702 = vmatpush1.msra.mxu0 %v108
    %1703 = vmatprep.subr.mxu0 %v111
    %1704 = vmatpush1.msra.mxu0 %v110
    %1705 = vmatprep.subr.mxu0 %v113
    %1706 = vmatpush1.msra.mxu0 %v112
    %1707 = vmatprep.subr.mxu0 0.0
    %1708 = vmatpush1.msra.mxu0 0.0
    %1709 = vmatprep.subr.mxu0 0.0
    %1710 = vmatpush1.msra.mxu0 0.0
    %1711 = vmatprep.subr.mxu0 0.0
    %1712 = vmatpush1.msra.mxu0 0.0
    %1713 = vmatprep.subr.mxu0 0.0
    %1714 = vmatpush1.msra.mxu0 0.0
    %1715 = vmatprep.subr.mxu0 0.0
    %1716 = vmatpush1.msra.mxu0 0.0
    %1717 = vmatprep.subr.mxu0 0.0
    %1718 = vmatpush1.msra.mxu0 0.0
    %1719 = vmatprep.subr.mxu0 0.0
    %1720 = vmatpush1.msra.mxu0 0.0
    %1721 = vmatprep.subr.mxu0 0.0
    %1722 = vmatpush1.msra.mxu0 0.0
    %1723 = vmatprep.subr.mxu0 0.0
    %1724 = vmatpush1.msra.mxu0 0.0
    %1725 = vmatprep.subr.mxu0 0.0
    %1726 = vmatpush1.msra.mxu0 0.0
    %1727 = vmatprep.subr.mxu0 0.0
    %1728 = vmatpush1.msra.mxu0 0.0
    %1729 = vmatprep.subr.mxu0 0.0
    %1730 = vmatpush1.msra.mxu0 0.0
    %1731 = vmatprep.subr.mxu0 0.0
    %1732 = vmatpush1.msra.mxu0 0.0
    %1733 = vmatprep.subr.mxu0 0.0
    %1734 = vmatpush1.msra.mxu0 0.0
    %1735 = vmatprep.subr.mxu0 0.0
    %1736 = vmatpush1.msra.mxu0 0.0
    %1737 = vmatprep.subr.mxu0 0.0
    %1738 = vmatpush1.msra.mxu0 0.0
    %1739 = vmatprep.mubr.f32.mxu0 0.0
    %1740 = vmatmul.mubr.f32.gmra.mrb[0].mxu0 %v1674
    %v1741 = vpop.f32.mrb[0].mxu0
    %v1742 = vadd.f32 %v258, %v1741
    %v1743 = vpop.f32.mrb[0].mxu0
    %v1744 = vadd.f32 %v262, %v1743
    %1745 = vdwg.mxu0
    %v1746 = vxor.u32 %v1742, 2147483648
    %v1747 = vxor.u32 %v1744, 2147483648
    %v1748 = vmul.f32 %v1746, 1.442695
    %v1749 = vpow.pop %v1748
    %v1750 = vmul.f32 %v1747, 1.442695
    %v1751 = vpow.pop %v1750
    %v1752 = vadd.f32 %v1749, 1.0
    %v1753 = vadd.f32 %v1751, 1.0
    %v1754 = vrcp.pop %v1752
    %v1755 = vmul.f32 1.0, %v1754
    %v1756 = vrcp.pop %v1753
    %v1757 = vmul.f32 1.0, %v1756
    %v1758 = vtanh.pop %v1744
    %v1759 = vmul.f32 %v1755, %v1534
    %1761 = vrot.lane.b32.xlu0 %v1758, 64
    %v1762 = vpop.permute.xlu0 %1761
    %v1764 = vmul.f32 %v1755, %v1762
    %1766 = vrot.lane.b32.xlu0 %v1764, 64
    %v1767 = vpop.permute.xlu0 %1766
    %v1769 = vadd.f32 %v1759, %v1767
    %v1770 = vtanh.pop %v1769
    %1772 = vrot.lane.b32.xlu0 %v1770, 64
    %v1773 = vpop.permute.xlu0 %1772
    %v1775 = vmul.f32 %v1757, %v1773
    %v1776 = vmin.f32 %v1775, 0.0
    %v1777 = vand.u32 2147483647, %v1775
    %v1778 = vsub.f32 0.0, %v1777
    %v1779 = vmul.f32 %v1778, 1.442695
    %v1780 = vpow.pop %v1779
    %v1781 = vadd.f32 %v1780, 1.0
    %v1782 = vlog2.pop %v1781
    %v1783 = vmul.f32 %v1782, 0.6931472
    %v1784 = vmul.f32 -0.5, %v1780
    %v1785 = vadd.f32 %v1784, 1.0
    %v1786 = vmul.f32 %v1785, %v1780
    %v1787 = vand.u32 2147483647, %v1780
    %vm1788 = vcmp.lt.f32.partialorder %v1787, 0.0004427343
    %v1789 = vsel %vm1788, %v1786, %v1783
    %v1790 = vsub.f32 %v1776, %v1789
    %1791 = vset.pattern.permute.xlu0 7
    %1792 = vperm.xlu0 %1791, %v63
    %v1793 = vpop.permute.xlu0 %1792
    %v1795 = vmul.f32 %v1793, %v124
    %v1796 = vmul.f32 %v1793, %v128
    %v1798 = vsel %vm133, %v1669, 0
    %1800 = vmatprep.subr.mxu0 %v66
    %1801 = vmatpush1.msra.mxu0 %v65
    %1802 = vmatprep.subr.mxu0 %v68
    %1803 = vmatpush1.msra.mxu0 %v67
    %1804 = vmatprep.subr.mxu0 %v70
    %1805 = vmatpush1.msra.mxu0 %v69
    %1806 = vmatprep.subr.mxu0 %v72
    %1807 = vmatpush1.msra.mxu0 %v71
    %1808 = vmatprep.subr.mxu0 %v74
    %1809 = vmatpush1.msra.mxu0 %v73
    %1810 = vmatprep.subr.mxu0 %v76
    %1811 = vmatpush1.msra.mxu0 %v75
    %1812 = vmatprep.subr.mxu0 %v78
    %1813 = vmatpush1.msra.mxu0 %v77
    %1814 = vmatprep.subr.mxu0 %v80
    %1815 = vmatpush1.msra.mxu0 %v79
    %1816 = vmatprep.subr.mxu0 0.0
    %1817 = vmatpush1.msra.mxu0 0.0
    %1818 = vmatprep.subr.mxu0 0.0
    %1819 = vmatpush1.msra.mxu0 0.0
    %1820 = vmatprep.subr.mxu0 0.0
    %1821 = vmatpush1.msra.mxu0 0.0
    %1822 = vmatprep.subr.mxu0 0.0
    %1823 = vmatpush1.msra.mxu0 0.0
    %1824 = vmatprep.subr.mxu0 0.0
    %1825 = vmatpush1.msra.mxu0 0.0
    %1826 = vmatprep.subr.mxu0 0.0
    %1827 = vmatpush1.msra.mxu0 0.0
    %1828 = vmatprep.subr.mxu0 0.0
    %1829 = vmatpush1.msra.mxu0 0.0
    %1830 = vmatprep.subr.mxu0 0.0
    %1831 = vmatpush1.msra.mxu0 0.0
    %1832 = vmatprep.subr.mxu0 0.0
    %1833 = vmatpush1.msra.mxu0 0.0
    %1834 = vmatprep.subr.mxu0 0.0
    %1835 = vmatpush1.msra.mxu0 0.0
    %1836 = vmatprep.subr.mxu0 0.0
    %1837 = vmatpush1.msra.mxu0 0.0
    %1838 = vmatprep.subr.mxu0 0.0
    %1839 = vmatpush1.msra.mxu0 0.0
    %1840 = vmatprep.subr.mxu0 0.0
    %1841 = vmatpush1.msra.mxu0 0.0
    %1842 = vmatprep.subr.mxu0 0.0
    %1843 = vmatpush1.msra.mxu0 0.0
    %1844 = vmatprep.subr.mxu0 0.0
    %1845 = vmatpush1.msra.mxu0 0.0
    %1846 = vmatprep.subr.mxu0 0.0
    %1847 = vmatpush1.msra.mxu0 0.0
    %1848 = vmatprep.subr.mxu0 0.0
    %1849 = vmatpush1.msra.mxu0 0.0
    %1850 = vmatprep.subr.mxu0 0.0
    %1851 = vmatpush1.msra.mxu0 0.0
    %1852 = vmatprep.subr.mxu0 0.0
    %1853 = vmatpush1.msra.mxu0 0.0
    %1854 = vmatprep.subr.mxu0 0.0
    %1855 = vmatpush1.msra.mxu0 0.0
    %1856 = vmatprep.subr.mxu0 0.0
    %1857 = vmatpush1.msra.mxu0 0.0
    %1858 = vmatprep.subr.mxu0 0.0
    %1859 = vmatpush1.msra.mxu0 0.0
    %1860 = vmatprep.subr.mxu0 0.0
    %1861 = vmatpush1.msra.mxu0 0.0
    %1862 = vmatprep.subr.mxu0 0.0
    %1863 = vmatpush1.msra.mxu0 0.0
    %1864 = vmatprep.mubr.f32.mxu0 0.0
    %1865 = vmatmul.mubr.f32.gmra.mrb[0].mxu0 %v1798
    %v1866 = vpop.f32.mrb[0].mxu0
    %v1867 = vadd.f32 0.0, %v1866
    %v1868 = vpop.f32.mrb[0].mxu0
    %v1869 = vadd.f32 0.0, %v1868
    %1870 = vdwg.mxu0
    %v1871 = vadd.f32 %v1795, %v1867
    %v1872 = vadd.f32 %v1796, %v1869
    %v1873 = vadd.f32 %v1871, %v214
    %v1874 = vadd.f32 %v1872, %v218
    %v1875 = vxor.u32 %v1873, 2147483648
    %v1876 = vxor.u32 %v1874, 2147483648
    %v1877 = vmul.f32 %v1875, 1.442695
    %v1878 = vpow.pop %v1877
    %v1879 = vmul.f32 %v1876, 1.442695
    %v1880 = vpow.pop %v1879
    %v1881 = vadd.f32 %v1878, 1.0
    %v1882 = vadd.f32 %v1880, 1.0
    %v1883 = vrcp.pop %v1881
    %v1884 = vmul.f32 1.0, %v1883
    %v1885 = vrcp.pop %v1882
    %v1886 = vmul.f32 1.0, %v1885
    %v1887 = vtanh.pop %v1874
    %v1888 = vmul.f32 %v1884, %v1663
    %1890 = vrot.lane.b32.xlu0 %v1887, 64
    %v1891 = vpop.permute.xlu0 %1890
    %v1893 = vmul.f32 %v1884, %v1891
    %1895 = vrot.lane.b32.xlu0 %v1893, 64
    %v1896 = vpop.permute.xlu0 %1895
    %v1898 = vadd.f32 %v1888, %v1896
    %v1899 = vtanh.pop %v1898
    %1901 = vrot.lane.b32.xlu0 %v1899, 64
    %v1902 = vpop.permute.xlu0 %1901
    %v1904 = vmul.f32 %v1886, %v1902
    %1906 = vrot.lane.b32.xlu0 %v1775, 64
    %v1907 = vpop.permute.xlu0 %1906
    %v1909 = vsel %vm133, %v1904, %v1907
    %1910 = vmatprep.subr.mxu0 %v83
    %1911 = vmatpush1.msra.mxu0 %v82
    %1912 = vmatprep.subr.mxu0 %v85
    %1913 = vmatpush1.msra.mxu0 %v84
    %1914 = vmatprep.subr.mxu0 %v87
    %1915 = vmatpush1.msra.mxu0 %v86
    %1916 = vmatprep.subr.mxu0 %v89
    %1917 = vmatpush1.msra.mxu0 %v88
    %1918 = vmatprep.subr.mxu0 %v91
    %1919 = vmatpush1.msra.mxu0 %v90
    %1920 = vmatprep.subr.mxu0 %v93
    %1921 = vmatpush1.msra.mxu0 %v92
    %1922 = vmatprep.subr.mxu0 %v95
    %1923 = vmatpush1.msra.mxu0 %v94
    %1924 = vmatprep.subr.mxu0 %v97
    %1925 = vmatpush1.msra.mxu0 %v96
    %1926 = vmatprep.subr.mxu0 %v99
    %1927 = vmatpush1.msra.mxu0 %v98
    %1928 = vmatprep.subr.mxu0 %v101
    %1929 = vmatpush1.msra.mxu0 %v100
    %1930 = vmatprep.subr.mxu0 %v103
    %1931 = vmatpush1.msra.mxu0 %v102
    %1932 = vmatprep.subr.mxu0 %v105
    %1933 = vmatpush1.msra.mxu0 %v104
    %1934 = vmatprep.subr.mxu0 %v107
    %1935 = vmatpush1.msra.mxu0 %v106
    %1936 = vmatprep.subr.mxu0 %v109
    %1937 = vmatpush1.msra.mxu0 %v108
    %1938 = vmatprep.subr.mxu0 %v111
    %1939 = vmatpush1.msra.mxu0 %v110
    %1940 = vmatprep.subr.mxu0 %v113
    %1941 = vmatpush1.msra.mxu0 %v112
    %1942 = vmatprep.subr.mxu0 0.0
    %1943 = vmatpush1.msra.mxu0 0.0
    %1944 = vmatprep.subr.mxu0 0.0
    %1945 = vmatpush1.msra.mxu0 0.0
    %1946 = vmatprep.subr.mxu0 0.0
    %1947 = vmatpush1.msra.mxu0 0.0
    %1948 = vmatprep.subr.mxu0 0.0
    %1949 = vmatpush1.msra.mxu0 0.0
    %1950 = vmatprep.subr.mxu0 0.0
    %1951 = vmatpush1.msra.mxu0 0.0
    %1952 = vmatprep.subr.mxu0 0.0
    %1953 = vmatpush1.msra.mxu0 0.0
    %1954 = vmatprep.subr.mxu0 0.0
    %1955 = vmatpush1.msra.mxu0 0.0
    %1956 = vmatprep.subr.mxu0 0.0
    %1957 = vmatpush1.msra.mxu0 0.0
    %1958 = vmatprep.subr.mxu0 0.0
    %1959 = vmatpush1.msra.mxu0 0.0
    %1960 = vmatprep.subr.mxu0 0.0
    %1961 = vmatpush1.msra.mxu0 0.0
    %1962 = vmatprep.subr.mxu0 0.0
    %1963 = vmatpush1.msra.mxu0 0.0
    %1964 = vmatprep.subr.mxu0 0.0
    %1965 = vmatpush1.msra.mxu0 0.0
    %1966 = vmatprep.subr.mxu0 0.0
    %1967 = vmatpush1.msra.mxu0 0.0
    %1968 = vmatprep.subr.mxu0 0.0
    %1969 = vmatpush1.msra.mxu0 0.0
    %1970 = vmatprep.subr.mxu0 0.0
    %1971 = vmatpush1.msra.mxu0 0.0
    %1972 = vmatprep.subr.mxu0 0.0
    %1973 = vmatpush1.msra.mxu0 0.0
    %1974 = vmatprep.mubr.f32.mxu0 0.0
    %1975 = vmatmul.mubr.f32.gmra.mrb[0].mxu0 %v1909
    %v1976 = vpop.f32.mrb[0].mxu0
    %v1977 = vadd.f32 %v258, %v1976
    %v1978 = vpop.f32.mrb[0].mxu0
    %v1979 = vadd.f32 %v262, %v1978
    %1980 = vdwg.mxu0
    %v1981 = vxor.u32 %v1977, 2147483648
    %v1982 = vxor.u32 %v1979, 2147483648
    %v1983 = vmul.f32 %v1981, 1.442695
    %v1984 = vpow.pop %v1983
    %v1985 = vmul.f32 %v1982, 1.442695
    %v1986 = vpow.pop %v1985
    %v1987 = vadd.f32 %v1984, 1.0
    %v1988 = vadd.f32 %v1986, 1.0
    %v1989 = vrcp.pop %v1987
    %v1990 = vmul.f32 1.0, %v1989
    %v1991 = vrcp.pop %v1988
    %v1992 = vmul.f32 1.0, %v1991
    %v1993 = vtanh.pop %v1979
    %v1994 = vmul.f32 %v1990, %v1769
    %1996 = vrot.lane.b32.xlu0 %v1993, 64
    %v1997 = vpop.permute.xlu0 %1996
    %v1999 = vmul.f32 %v1990, %v1997
    %2001 = vrot.lane.b32.xlu0 %v1999, 64
    %v2002 = vpop.permute.xlu0 %2001
    %v2004 = vadd.f32 %v1994, %v2002
    %v2005 = vtanh.pop %v2004
    %2007 = vrot.lane.b32.xlu0 %v2005, 64
    %v2008 = vpop.permute.xlu0 %2007
    %v2010 = vmul.f32 %v1992, %v2008
    %v2011 = vmin.f32 %v2010, 0.0
    %v2012 = vand.u32 2147483647, %v2010
    %v2013 = vsub.f32 0.0, %v2012
    %v2014 = vmul.f32 %v2013, 1.442695
    %v2015 = vpow.pop %v2014
    %v2016 = vadd.f32 %v2015, 1.0
    %v2017 = vlog2.pop %v2016
    %v2018 = vmul.f32 %v2017, 0.6931472
    %v2019 = vmul.f32 -0.5, %v2015
    %v2020 = vadd.f32 %v2019, 1.0
    %v2021 = vmul.f32 %v2020, %v2015
    %v2022 = vand.u32 2147483647, %v2015
    %vm2023 = vcmp.lt.f32.partialorder %v2022, 0.0004427343
    %v2024 = vsel %vm2023, %v2021, %v2018
    %v2025 = vsub.f32 %v2011, %v2024
    %2027 = vrot.lane.b32.xlu0 %v615, 64
    %v2028 = vpop.permute.xlu0 %2027
    %2031 = vrot.lane.b32.xlu0 %v1085, 64
    %v2032 = vpop.permute.xlu0 %2031
    %2035 = vrot.lane.b32.xlu0 %v1555, 64
    %v2036 = vpop.permute.xlu0 %2035
    %2039 = vrot.lane.b32.xlu0 %v2025, 64
    %v2040 = vpop.permute.xlu0 %2039
    %v2042 = vsel %vm133, %v380, %v2028
    %v2043 = vsel %vm133, %v850, %v2032
    %v2044 = vsel %vm133, %v1320, %v2036
    %v2045 = vsel %vm133, %v1790, %v2040
    %2046 = vst [vmem:[#allocation8] sm:$0xff] %v2042
    %2047 = vst [vmem:[#allocation8 + $0x8] sm:$0xff] %v2043
    %2048 = vst [vmem:[#allocation8 + $0x10] sm:$0xff] %v2044
    %2049 = vst [vmem:[#allocation8 + $0x18] sm:$0xff] %v2045
    // Predicated region
    $region38: #{tpu_custom_call.1} parent=1 // pred_check
      _
    $region39: #{tpu_custom_call.1} parent=1 // pred_check_branch
      %2051 = sbr.rel (0) target = $region41
    $region40: #{tpu_custom_call.1} parent=1 // pred_region
      %s2053 = ssub.s32 512, 512
      %2054 = vsyncadd [#allocation4], %s2053
      %s2056 = sshll.u32 [#allocation8], 4
      %s2057 = int_to_ptr.vmem [resolvable:$true] %s2056
      %2059 = dma.vmem_to_hbm [thread:$0]  %s2057, 512, %s6, [#allocation4]
    $region41: #{tpu_custom_call.1} parent=1 // pred_fallthru
      _
    // Predicated region
    $region42: #{tpu_custom_call.1} parent=1 // pred_check
      _
    $region43: #{tpu_custom_call.1} parent=1 // pred_check_branch
      %2061 = sbr.rel (0) target = $region45
    $region44: #{tpu_custom_call.1} parent=1 // pred_region
      %2062 = dma.done [#allocation4], 512
    $region45: #{tpu_custom_call.1} parent=1 // pred_fallthru
      _
    %2063 = vsyncpa [#allocation3], 1
    %2064 = vsyncpa [#allocation6], 1
    %2065 = vsyncpa [#allocation4], 1

</llo_original>
